<compile_context>
chip_gen: v5e
topology: v5e:2x2
jax: 0.10.0
libtpu: 0.0.40
codegen_flags: <defaults>
</compile_context>

<pallas_src>
import functools

import jax
import jax.numpy as jnp
from jax.experimental import pallas as pl
from jax.experimental.pallas import tpu as pltpu


def _fused_mlp_kernel(
    x_ref,
    w2_ref, w3_ref, w4_ref, w5_ref, w6_ref, w7_ref,
    bias_ref,
    out5_ref, out6_ref,
    *, negative_slope,
):
    """Whole 6-layer stack in one kernel body; intermediates stay in VMEM/vregs."""

    def leaky(y):
        # Compare/select on the f32 accumulator (VPU; safe on v5e which lacks
        # native bf16 VPU ops).
        return jnp.where(y >= 0, y, negative_slope * y)

    def linear(h, w_ref, bias_row):
        # Cast activations to the weight dtype (bf16) so the MXU runs a native
        # bf16 x bf16 matmul with f32 accumulation; bias is added in f32.
        width = w_ref.shape[1]
        y = jnp.dot(h.astype(w_ref.dtype), w_ref[...],
                    preferred_element_type=jnp.float32)
        return y + bias_ref[bias_row:bias_row + 1, :width]

    x = x_ref[...].astype(jnp.float32)
    o1 = linear(x, w2_ref, 0)            # fc2 (no activation)
    o2 = leaky(linear(o1, w3_ref, 1))    # fc3 + LeakyReLU
    o3 = leaky(linear(o2, w4_ref, 2))    # fc4 + LeakyReLU
    o4 = leaky(linear(o3, w5_ref, 3))    # fc5 + LeakyReLU
    o5 = leaky(linear(o4, w6_ref, 4))    # fc6 + LeakyReLU
    o6 = linear(o5, w7_ref, 5)           # fc7 (lane-padded to 128 cols)

    out5_ref[...] = o5.astype(out5_ref.dtype)
    out6_ref[...] = o6.astype(out6_ref.dtype)


def fused_forward(params, x1, *, num_classes, negative_slope=0.01,
                  weight_dtype=jnp.bfloat16, batch_tile=128):
    """Single fused Pallas call for the whole Server_ResNet_standalone stack."""
    (w2, b2), (w3, b3), (w4, b4), (w5, b5), (w6, b6), (w7, b7) = params
    B, K = x1.shape
    assert K == w2.shape[0], (K, w2.shape)
    out_dtype = x1.dtype
    feat5 = int(w6.shape[1])                       # 128 (out5 width)

    # Pad fc7 out-dim to a lane-dense multiple of 128; slice back afterwards.
    n_pad = max(128, ((num_classes + 127) // 128) * 128)
    w7p = jnp.pad(w7, ((0, 0), (0, n_pad - w7.shape[1])))
    b7p = jnp.pad(b7, ((0, n_pad - b7.shape[0]),))

    # Weights go to the kernel in bf16 (halves HBM bytes; native MXU dtype).
    weights = [w.astype(weight_dtype) for w in (w2, w3, w4, w5, w6, w7p)]

    # Pack all six biases into ONE lane-dense (8, max_width) f32 tile.
    bias_rows = [b2, b3, b4, b5, b6, b7p]
    max_w = max(int(b.shape[0]) for b in bias_rows)
    bias_pack = jnp.zeros((8, max_w), jnp.float32)
    for r, b in enumerate(bias_rows):
        bias_pack = bias_pack.at[r, : b.shape[0]].set(b.astype(jnp.float32))

    operands = [x1] + weights + [bias_pack]

    kernel = functools.partial(_fused_mlp_kernel, negative_slope=negative_slope)

    # Advisory cost hint for XLA scheduling around the custom call.
    mm_dims = [w.shape for w in weights]
    flops = 2 * B * sum(int(k) * int(n) for k, n in mm_dims)
    bytes_accessed = (
        sum(int(a.size) * jnp.dtype(a.dtype).itemsize for a in operands)
        + B * (feat5 + n_pad) * jnp.dtype(out_dtype).itemsize
    )
    cost = pl.CostEstimate(flops=flops, transcendentals=0,
                           bytes_accessed=bytes_accessed)

    # Use the batch-tiled grid only when it has >= 2 steps (so both v7x
    # TensorCores get work); otherwise everything is fully VMEM-resident.
    use_batch_grid = B >= 2 * batch_tile

    if not use_batch_grid:
        # Small-batch path: trivial grid, every operand fully VMEM-resident.
        vmem = pl.BlockSpec(memory_space=pltpu.MemorySpace.VMEM)
        out_shape = (
            jax.ShapeDtypeStruct((B, feat5), out_dtype),
            jax.ShapeDtypeStruct((B, n_pad), out_dtype),
        )
        out5, out6p = pl.pallas_call(
            kernel,
            out_shape=out_shape,
            in_specs=[vmem] * len(operands),
            out_specs=(vmem, vmem),
            cost_estimate=cost,
        )(*operands)
    else:
        # Large-batch path: tile the batch axis, keep bf16 weights pinned and
        # SINGLE-buffered in VMEM across iterations, shard across TensorCores.
        tb = batch_tile
        Bp = ((B + tb - 1) // tb) * tb          # pad to tile multiple (no fallback)
        x_p = jnp.pad(x1, ((0, Bp - B), (0, 0))) if Bp != B else x1
        operands[0] = x_p

        def pinned(shape):
            nd = len(shape)

            def idx(i):
                return (0,) * nd

            # Grid-invariant block: single buffer (double-buffering it would
            # just waste ~1.7 MB of VMEM).
            return pl.BlockSpec(shape, idx, pipeline_mode=pl.Buffered(1))

        in_specs = [pl.BlockSpec((tb, K), lambda i: (i, 0))]
        in_specs += [pinned(tuple(a.shape)) for a in operands[1:]]
        out_specs = (
            pl.BlockSpec((tb, feat5), lambda i: (i, 0)),
            pl.BlockSpec((tb, n_pad), lambda i: (i, 0)),
        )
        out_shape = (
            jax.ShapeDtypeStruct((Bp, feat5), out_dtype),
            jax.ShapeDtypeStruct((Bp, n_pad), out_dtype),
        )
        out5, out6p = pl.pallas_call(
            kernel,
            out_shape=out_shape,
            grid=(Bp // tb,),
            in_specs=in_specs,
            out_specs=out_specs,
            compiler_params=pltpu.CompilerParams(
                dimension_semantics=("parallel",),
            ),
            cost_estimate=cost,
        )(*operands)
        out5 = out5[:B]
        out6p = out6p[:B]

    return out5, out6p[:, :num_classes]


def init_linear_params(key, in_features, out_features, dtype=jnp.float32):
    """Deterministic init mirroring nn.Linear's U(-1/sqrt(in), 1/sqrt(in))."""
    kw, kb = jax.random.split(key)
    bound = 1.0 / jnp.sqrt(jnp.asarray(in_features, dtype))
    # Stored as (in_features, out_features), i.e. PyTorch weight transposed.
    w = jax.random.uniform(kw, (in_features, out_features), dtype, -bound, bound)
    b = jax.random.uniform(kb, (out_features,), dtype, -bound, bound)
    return w, b


def make_params(hidden2=128, num_classes=2, seed=0):
    key = jax.random.PRNGKey(seed)
    keys = jax.random.split(key, 6)
    dims = [
        (hidden2, hidden2),   # fc2
        (hidden2, 1024),      # fc3
        (1024, 512),          # fc4
        (512, 256),           # fc5
        (256, 128),           # fc6
        (128, num_classes),   # fc7
    ]
    return [init_linear_params(k, i, o) for k, (i, o) in zip(keys, dims)]


def server_resnet_standalone_forward(params, x1, x2):
    # x2 is accepted for signature parity with the PyTorch module but unused,
    # exactly as in the reference forward().
    del x2
    num_classes = params[-1][0].shape[1]
    return fused_forward(params, x1, num_classes=num_classes)


if __name__ == "__main__":
    hidden2 = 128
    num_classes = 2
    batch = 8

    params = make_params(hidden2=hidden2, num_classes=num_classes, seed=0)

    key = jax.random.PRNGKey(0)
    k1, k2 = jax.random.split(key)
    x1 = jax.random.normal(k1, (batch, hidden2), jnp.float32)
    x2 = jax.random.normal(k2, (batch, hidden2), jnp.float32)  # unused, as in reference

    fwd = jax.jit(server_resnet_standalone_forward)
    out5, out6 = fwd(params, x1, x2)
    jax.block_until_ready(out5)
    jax.block_until_ready(out6)

    # Reference in plain JAX mirroring the kernel math (bf16 weights/acts on
    # the MXU, f32 accumulation, f32 bias add, LeakyReLU on the f32 result).
    def ref_forward(params, x):
        act = lambda y: jnp.where(y >= 0, y, 0.01 * y)

        def lin(h, w, b):
            return jnp.dot(h.astype(jnp.bfloat16), w.astype(jnp.bfloat16),
                           preferred_element_type=jnp.float32) + b

        (w2, b2), (w3, b3), (w4, b4), (w5, b5), (w6, b6), (w7, b7) = params
        o1 = lin(x, w2, b2)
        o2 = act(lin(o1, w3, b3))
        o3 = act(lin(o2, w4, b4))
        o4 = act(lin(o3, w5, b5))
        o5 = act(lin(o4, w6, b6))
        o6 = lin(o5, w7, b7)
        return o5, o6

    r5, r6 = ref_forward(params, x1)
    assert out5.shape == (batch, 128) and out6.shape == (batch, num_classes)
    assert jnp.allclose(out5, r5, atol=1e-2, rtol=1e-2)
    assert jnp.allclose(out6, r6, atol=1e-2, rtol=1e-2)

    print("KERNEL_OK")
</pallas_src>

<mosaic_0001>
module attributes {stable_mosaic.version = 11 : i64} {
  func.func @_fused_mlp_kernel(%arg0: memref<8x128xf32, #tpu.memory_space<vmem>>, %arg1: memref<128x128xbf16, #tpu.memory_space<vmem>>, %arg2: memref<128x1024xbf16, #tpu.memory_space<vmem>>, %arg3: memref<1024x512xbf16, #tpu.memory_space<vmem>>, %arg4: memref<512x256xbf16, #tpu.memory_space<vmem>>, %arg5: memref<256x128xbf16, #tpu.memory_space<vmem>>, %arg6: memref<128x128xbf16, #tpu.memory_space<vmem>>, %arg7: memref<8x1024xf32, #tpu.memory_space<vmem>>, %arg8: memref<8x128xf32, #tpu.memory_space<vmem>>, %arg9: memref<8x128xf32, #tpu.memory_space<vmem>>) attributes {dimension_semantics = [], scalar_prefetch = 0 : i64, scratch_operands = 0 : i64, tpu.core_type = #tpu.core_type<tc>} {
    %c0 = arith.constant 0 : index
    %c0_0 = arith.constant 0 : index
    %0 = vector.load %arg0[%c0, %c0_0] : memref<8x128xf32, #tpu.memory_space<vmem>>, vector<8x128xf32>
    %1 = arith.truncf %0 : vector<8x128xf32> to vector<8x128xbf16>
    %c0_1 = arith.constant 0 : index
    %c0_2 = arith.constant 0 : index
    %2 = vector.load %arg1[%c0_1, %c0_2] : memref<128x128xbf16, #tpu.memory_space<vmem>>, vector<128x128xbf16>
    %cst = arith.constant dense<0.000000e+00> : vector<8x128xf32>
    %3 = tpu.matmul %1, %2, %cst {dimension_numbers = #tpu.dot_dimension_numbers<[1], [0], [0], [1], [0, 0, 1, 1], [], []>} : vector<8x128xbf16>, vector<128x128xbf16>, vector<8x128xf32> -> vector<8x128xf32>
    %c0_3 = arith.constant 0 : index
    %c0_4 = arith.constant 0 : index
    %4 = vector.load %arg7[%c0_3, %c0_4] : memref<8x1024xf32, #tpu.memory_space<vmem>>, vector<1x128xf32>
    %5 = vector.broadcast %4 : vector<1x128xf32> to vector<8x128xf32>
    %6 = arith.addf %3, %5 : vector<8x128xf32>
    %7 = arith.truncf %6 : vector<8x128xf32> to vector<8x128xbf16>
    %c0_5 = arith.constant 0 : index
    %c0_6 = arith.constant 0 : index
    %8 = vector.load %arg2[%c0_5, %c0_6] : memref<128x1024xbf16, #tpu.memory_space<vmem>>, vector<128x1024xbf16>
    %cst_7 = arith.constant dense<0.000000e+00> : vector<8x1024xf32>
    %9 = tpu.matmul %7, %8, %cst_7 {dimension_numbers = #tpu.dot_dimension_numbers<[1], [0], [0], [1], [0, 0, 1, 1], [], []>} : vector<8x128xbf16>, vector<128x1024xbf16>, vector<8x1024xf32> -> vector<8x1024xf32>
    %c1 = arith.constant 1 : index
    %c0_8 = arith.constant 0 : index
    %10 = vector.load %arg7[%c1, %c0_8] : memref<8x1024xf32, #tpu.memory_space<vmem>>, vector<1x1024xf32>
    %11 = vector.broadcast %10 : vector<1x1024xf32> to vector<8x1024xf32>
    %12 = arith.addf %9, %11 : vector<8x1024xf32>
    %cst_9 = arith.constant 0.000000e+00 : f32
    %13 = vector.broadcast %cst_9 : f32 to vector<8x1024xf32>
    %14 = arith.cmpf oge, %12, %13 : vector<8x1024xf32>
    %cst_10 = arith.constant 0.00999999977 : f32
    %15 = vector.broadcast %cst_10 : f32 to vector<8x1024xf32>
    %16 = arith.mulf %15, %12 : vector<8x1024xf32>
    %17 = arith.select %14, %12, %16 : vector<8x1024xi1>, vector<8x1024xf32>
    %18 = arith.truncf %17 : vector<8x1024xf32> to vector<8x1024xbf16>
    %c0_11 = arith.constant 0 : index
    %c0_12 = arith.constant 0 : index
    %19 = vector.load %arg3[%c0_11, %c0_12] : memref<1024x512xbf16, #tpu.memory_space<vmem>>, vector<1024x512xbf16>
    %cst_13 = arith.constant dense<0.000000e+00> : vector<8x512xf32>
    %20 = tpu.matmul %18, %19, %cst_13 {dimension_numbers = #tpu.dot_dimension_numbers<[1], [0], [0], [1], [0, 0, 1, 1], [], []>} : vector<8x1024xbf16>, vector<1024x512xbf16>, vector<8x512xf32> -> vector<8x512xf32>
    %c2 = arith.constant 2 : index
    %c0_14 = arith.constant 0 : index
    %21 = vector.load %arg7[%c2, %c0_14] : memref<8x1024xf32, #tpu.memory_space<vmem>>, vector<1x512xf32>
    %22 = vector.broadcast %21 : vector<1x512xf32> to vector<8x512xf32>
    %23 = arith.addf %20, %22 : vector<8x512xf32>
    %cst_15 = arith.constant 0.000000e+00 : f32
    %24 = vector.broadcast %cst_15 : f32 to vector<8x512xf32>
    %25 = arith.cmpf oge, %23, %24 : vector<8x512xf32>
    %cst_16 = arith.constant 0.00999999977 : f32
    %26 = vector.broadcast %cst_16 : f32 to vector<8x512xf32>
    %27 = arith.mulf %26, %23 : vector<8x512xf32>
    %28 = arith.select %25, %23, %27 : vector<8x512xi1>, vector<8x512xf32>
    %29 = arith.truncf %28 : vector<8x512xf32> to vector<8x512xbf16>
    %c0_17 = arith.constant 0 : index
    %c0_18 = arith.constant 0 : index
    %30 = vector.load %arg4[%c0_17, %c0_18] : memref<512x256xbf16, #tpu.memory_space<vmem>>, vector<512x256xbf16>
    %cst_19 = arith.constant dense<0.000000e+00> : vector<8x256xf32>
    %31 = tpu.matmul %29, %30, %cst_19 {dimension_numbers = #tpu.dot_dimension_numbers<[1], [0], [0], [1], [0, 0, 1, 1], [], []>} : vector<8x512xbf16>, vector<512x256xbf16>, vector<8x256xf32> -> vector<8x256xf32>
    %c3 = arith.constant 3 : index
    %c0_20 = arith.constant 0 : index
    %32 = vector.load %arg7[%c3, %c0_20] : memref<8x1024xf32, #tpu.memory_space<vmem>>, vector<1x256xf32>
    %33 = vector.broadcast %32 : vector<1x256xf32> to vector<8x256xf32>
    %34 = arith.addf %31, %33 : vector<8x256xf32>
    %cst_21 = arith.constant 0.000000e+00 : f32
    %35 = vector.broadcast %cst_21 : f32 to vector<8x256xf32>
    %36 = arith.cmpf oge, %34, %35 : vector<8x256xf32>
    %cst_22 = arith.constant 0.00999999977 : f32
    %37 = vector.broadcast %cst_22 : f32 to vector<8x256xf32>
    %38 = arith.mulf %37, %34 : vector<8x256xf32>
    %39 = arith.select %36, %34, %38 : vector<8x256xi1>, vector<8x256xf32>
    %40 = arith.truncf %39 : vector<8x256xf32> to vector<8x256xbf16>
    %c0_23 = arith.constant 0 : index
    %c0_24 = arith.constant 0 : index
    %41 = vector.load %arg5[%c0_23, %c0_24] : memref<256x128xbf16, #tpu.memory_space<vmem>>, vector<256x128xbf16>
    %cst_25 = arith.constant dense<0.000000e+00> : vector<8x128xf32>
    %42 = tpu.matmul %40, %41, %cst_25 {dimension_numbers = #tpu.dot_dimension_numbers<[1], [0], [0], [1], [0, 0, 1, 1], [], []>} : vector<8x256xbf16>, vector<256x128xbf16>, vector<8x128xf32> -> vector<8x128xf32>
    %c4 = arith.constant 4 : index
    %c0_26 = arith.constant 0 : index
    %43 = vector.load %arg7[%c4, %c0_26] : memref<8x1024xf32, #tpu.memory_space<vmem>>, vector<1x128xf32>
    %44 = vector.broadcast %43 : vector<1x128xf32> to vector<8x128xf32>
    %45 = arith.addf %42, %44 : vector<8x128xf32>
    %cst_27 = arith.constant 0.000000e+00 : f32
    %46 = vector.broadcast %cst_27 : f32 to vector<8x128xf32>
    %47 = arith.cmpf oge, %45, %46 : vector<8x128xf32>
    %cst_28 = arith.constant 0.00999999977 : f32
    %48 = vector.broadcast %cst_28 : f32 to vector<8x128xf32>
    %49 = arith.mulf %48, %45 : vector<8x128xf32>
    %50 = arith.select %47, %45, %49 : vector<8x128xi1>, vector<8x128xf32>
    %51 = arith.truncf %50 : vector<8x128xf32> to vector<8x128xbf16>
    %c0_29 = arith.constant 0 : index
    %c0_30 = arith.constant 0 : index
    %52 = vector.load %arg6[%c0_29, %c0_30] : memref<128x128xbf16, #tpu.memory_space<vmem>>, vector<128x128xbf16>
    %cst_31 = arith.constant dense<0.000000e+00> : vector<8x128xf32>
    %53 = tpu.matmul %51, %52, %cst_31 {dimension_numbers = #tpu.dot_dimension_numbers<[1], [0], [0], [1], [0, 0, 1, 1], [], []>} : vector<8x128xbf16>, vector<128x128xbf16>, vector<8x128xf32> -> vector<8x128xf32>
    %c5 = arith.constant 5 : index
    %c0_32 = arith.constant 0 : index
    %54 = vector.load %arg7[%c5, %c0_32] : memref<8x1024xf32, #tpu.memory_space<vmem>>, vector<1x128xf32>
    %55 = vector.broadcast %54 : vector<1x128xf32> to vector<8x128xf32>
    %56 = arith.addf %53, %55 : vector<8x128xf32>
    %c0_33 = arith.constant 0 : index
    %c0_34 = arith.constant 0 : index
    %57 = vector.load %arg8[%c0_33, %c0_34] : memref<8x128xf32, #tpu.memory_space<vmem>>, vector<8x128xf32>
    tpu.vector_store %arg8[%c0_33, %c0_34], %50 {strides = array<i32>} : memref<8x128xf32, #tpu.memory_space<vmem>>, vector<8x128xf32>,
    %c0_35 = arith.constant 0 : index
    %c0_36 = arith.constant 0 : index
    %58 = vector.load %arg9[%c0_35, %c0_36] : memref<8x128xf32, #tpu.memory_space<vmem>>, vector<8x128xf32>
    tpu.vector_store %arg9[%c0_35, %c0_36], %56 {strides = array<i32>} : memref<8x128xf32, #tpu.memory_space<vmem>>, vector<8x128xf32>,
    return
  }
}

</mosaic_0001>

<llo_original>
// kernel: server_resnet_standalone_forward.1
$region0: #{server_resnet_standalone_forward.1}
  #allocation0 [shape = 'u32[]', space=smem, size = 0x4, offset = 0x4, fixed_abs, tag = 'smem constant byte address 0x4 - core index']
  #allocation1 [shape = 'u32[72,128]{1,0:T(1,128)}', space=vmem, size = 0x9000, scoped, tag = 'internal scratch']
  %s0 = inlined_call_operand.vmem [shape: f32[8,128], index: 0, kind: input, shape index: {}]
  %s1 = inlined_call_operand.vmem [shape: bf16[128,128], index: 1, kind: input, shape index: {}]
  %s2 = inlined_call_operand.vmem [shape: bf16[128,1024], index: 2, kind: input, shape index: {}]
  %s3 = inlined_call_operand.vmem [shape: bf16[1024,512], index: 3, kind: input, shape index: {}]
  %s4 = inlined_call_operand.vmem [shape: bf16[512,256], index: 4, kind: input, shape index: {}]
  %s5 = inlined_call_operand.vmem [shape: bf16[256,128], index: 5, kind: input, shape index: {}]
  %s6 = inlined_call_operand.vmem [shape: bf16[128,128], index: 6, kind: input, shape index: {}]
  %s7 = inlined_call_operand.vmem [shape: f32[8,1024], index: 7, kind: input, shape index: {}]
  %s8 = inlined_call_operand.hbm [shape: f32[8,128], index: 8, kind: output, shape index: {0}]
  %s9 = inlined_call_operand.vmem [shape: f32[8,128], index: 9, kind: output, shape index: {1}]
  %10 = xla_tuple %s8, %s9
  %s11 = sld [smem:[#allocation0]]
  $region50: #{server_resnet_standalone_forward.1} parent=0
    _
  %s13 = ssub.s32 1, %s11
  %s14 = scalar_select 0, %s13, %s11
  $region1: #{server_resnet_standalone_forward.1} parent=0
    #allocation2 [shape = 'u8[4096]{0}', space=vmem, size = 0x1000, scoped, tag = 'output window, operand 0, single buffered']
    #allocation3 [shape = 's32[1]{0}', space=sflag, size = 0x4, scoped, tag = 'scoped memory for server_resnet_standalone_forward.1']
    %15 = vsyncpa [#allocation3], 0
    // Predicated region
    $region2: #{server_resnet_standalone_forward.1} parent=1 // pred_check
      _
    $region3: #{server_resnet_standalone_forward.1} parent=1 // pred_check_branch
      %17 = sbr.rel (0) target = $region5
    $region4: #{server_resnet_standalone_forward.1} parent=1 // pred_region
      _
    $region5: #{server_resnet_standalone_forward.1} parent=1 // pred_fallthru
      _
    // Predicated region
    $region6: #{server_resnet_standalone_forward.1} parent=1 // pred_check
      _
    $region7: #{server_resnet_standalone_forward.1} parent=1 // pred_check_branch
      %19 = sbr.rel (0) target = $region9
    $region8: #{server_resnet_standalone_forward.1} parent=1 // pred_region
      _
    $region9: #{server_resnet_standalone_forward.1} parent=1 // pred_fallthru
      _
    // Predicated region
    $region10: #{server_resnet_standalone_forward.1} parent=1 // pred_check
      _
    $region11: #{server_resnet_standalone_forward.1} parent=1 // pred_check_branch
      %21 = sbr.rel (0) target = $region13
    $region12: #{server_resnet_standalone_forward.1} parent=1 // pred_region
      _
    $region13: #{server_resnet_standalone_forward.1} parent=1 // pred_fallthru
      _
    // Predicated region
    $region14: #{server_resnet_standalone_forward.1} parent=1 // pred_check
      _
    $region15: #{server_resnet_standalone_forward.1} parent=1 // pred_check_branch
      %23 = sbr.rel (0) target = $region17
    $region16: #{server_resnet_standalone_forward.1} parent=1 // pred_region
      _
    $region17: #{server_resnet_standalone_forward.1} parent=1 // pred_fallthru
      _
    // Predicated region
    $region18: #{server_resnet_standalone_forward.1} parent=1 // pred_check
      _
    $region19: #{server_resnet_standalone_forward.1} parent=1 // pred_check_branch
      %25 = sbr.rel (0) target = $region21
    $region20: #{server_resnet_standalone_forward.1} parent=1 // pred_region
      _
    $region21: #{server_resnet_standalone_forward.1} parent=1 // pred_fallthru
      _
    // Predicated region
    $region22: #{server_resnet_standalone_forward.1} parent=1 // pred_check
      _
    $region23: #{server_resnet_standalone_forward.1} parent=1 // pred_check_branch
      %27 = sbr.rel (0) target = $region25
    $region24: #{server_resnet_standalone_forward.1} parent=1 // pred_region
      _
    $region25: #{server_resnet_standalone_forward.1} parent=1 // pred_fallthru
      _
    // Predicated region
    $region26: #{server_resnet_standalone_forward.1} parent=1 // pred_check
      _
    $region27: #{server_resnet_standalone_forward.1} parent=1 // pred_check_branch
      %29 = sbr.rel (0) target = $region29
    $region28: #{server_resnet_standalone_forward.1} parent=1 // pred_region
      _
    $region29: #{server_resnet_standalone_forward.1} parent=1 // pred_fallthru
      _
    // Predicated region
    $region30: #{server_resnet_standalone_forward.1} parent=1 // pred_check
      _
    $region31: #{server_resnet_standalone_forward.1} parent=1 // pred_check_branch
      %31 = sbr.rel (0) target = $region33
    $region32: #{server_resnet_standalone_forward.1} parent=1 // pred_region
      _
    $region33: #{server_resnet_standalone_forward.1} parent=1 // pred_fallthru
      _
    %v32 = vld [vmem:[%s0] sm:$0xff]
    %v33 = vpack.c.bf16 %v32, %v32
    %v34 = vld [vmem:[%s1] sm:$0xf]
    %v35 = vld [vmem:[%s1 + $0x4] sm:$0xf]
    %v36 = vld [vmem:[%s1 + $0x8] sm:$0xf]
    %v37 = vld [vmem:[%s1 + $0xc] sm:$0xf]
    %v38 = vld [vmem:[%s1 + $0x10] sm:$0xf]
    %v39 = vld [vmem:[%s1 + $0x14] sm:$0xf]
    %v40 = vld [vmem:[%s1 + $0x18] sm:$0xf]
    %v41 = vld [vmem:[%s1 + $0x1c] sm:$0xf]
    %v42 = vld [vmem:[%s1 + $0x20] sm:$0xf]
    %v43 = vld [vmem:[%s1 + $0x24] sm:$0xf]
    %v44 = vld [vmem:[%s1 + $0x28] sm:$0xf]
    %v45 = vld [vmem:[%s1 + $0x2c] sm:$0xf]
    %v46 = vld [vmem:[%s1 + $0x30] sm:$0xf]
    %v47 = vld [vmem:[%s1 + $0x34] sm:$0xf]
    %v48 = vld [vmem:[%s1 + $0x38] sm:$0xf]
    %v49 = vld [vmem:[%s1 + $0x3c] sm:$0xf]
    %v50 = vld [vmem:[%s7] ss:$0 sm:$0xff]
    %v67 = vunpack.c.l.b16 %v34
    %v68 = vunpack.c.l.b16 %v35
    %v69 = vunpack.c.l.b16 %v36
    %v70 = vunpack.c.l.b16 %v37
    %v71 = vunpack.c.l.b16 %v38
    %v72 = vunpack.c.l.b16 %v39
    %v73 = vunpack.c.l.b16 %v40
    %v74 = vunpack.c.l.b16 %v41
    %v75 = vunpack.c.l.b16 %v42
    %v76 = vunpack.c.l.b16 %v43
    %v77 = vunpack.c.l.b16 %v44
    %v78 = vunpack.c.l.b16 %v45
    %v79 = vunpack.c.l.b16 %v46
    %v80 = vunpack.c.l.b16 %v47
    %v81 = vunpack.c.l.b16 %v48
    %v82 = vunpack.c.l.b16 %v49
    %v83 = vpack.c.b16 %v68, %v67
    %v84 = vpack.c.b16 %v70, %v69
    %v85 = vpack.c.b16 %v72, %v71
    %v86 = vpack.c.b16 %v74, %v73
    %v87 = vpack.c.b16 %v76, %v75
    %v88 = vpack.c.b16 %v78, %v77
    %v89 = vpack.c.b16 %v80, %v79
    %v90 = vpack.c.b16 %v82, %v81
    %99 = vmatpush.bf16.msra.mxu0 %v90
    %100 = vmatpush.bf16.msra.mxu0 %v89
    %101 = vmatpush.bf16.msra.mxu0 %v88
    %102 = vmatpush.bf16.msra.mxu0 %v87
    %103 = vmatpush.bf16.msra.mxu0 %v86
    %104 = vmatpush.bf16.msra.mxu0 %v85
    %105 = vmatpush.bf16.msra.mxu0 %v84
    %106 = vmatpush.bf16.msra.mxu0 %v83
    %107 = vmatmul.bf16.gmra.mxu0 %v33
    %v108 = vpop.f32.mrf.mxu0
    %v109 = vadd.f32 %v50, %v108
    %v110 = vpop.f32.mrf.mxu0
    %111 = vdwg.mxu0
    %v112 = vpack.c.bf16 %v109, %v109
    %v113 = vld [vmem:[%s2] sm:$0xff]
    %v114 = vld [vmem:[%s2 + $0x8] sm:$0xff]
    %v115 = vld [vmem:[%s2 + $0x10] sm:$0xff]
    %v116 = vld [vmem:[%s2 + $0x18] sm:$0xff]
    %v117 = vld [vmem:[%s2 + $0x20] sm:$0xff]
    %v118 = vld [vmem:[%s2 + $0x28] sm:$0xff]
    %v119 = vld [vmem:[%s2 + $0x30] sm:$0xff]
    %v120 = vld [vmem:[%s2 + $0x38] sm:$0xff]
    %v121 = vld [vmem:[%s2 + $0x40] sm:$0xff]
    %v122 = vld [vmem:[%s2 + $0x48] sm:$0xff]
    %v123 = vld [vmem:[%s2 + $0x50] sm:$0xff]
    %v124 = vld [vmem:[%s2 + $0x58] sm:$0xff]
    %v125 = vld [vmem:[%s2 + $0x60] sm:$0xff]
    %v126 = vld [vmem:[%s2 + $0x68] sm:$0xff]
    %v127 = vld [vmem:[%s2 + $0x70] sm:$0xff]
    %v128 = vld [vmem:[%s2 + $0x78] sm:$0xff]
    %v129 = vld [vmem:[%s2 + $0x80] sm:$0xff]
    %v130 = vld [vmem:[%s2 + $0x88] sm:$0xff]
    %v131 = vld [vmem:[%s2 + $0x90] sm:$0xff]
    %v132 = vld [vmem:[%s2 + $0x98] sm:$0xff]
    %v133 = vld [vmem:[%s2 + $0xa0] sm:$0xff]
    %v134 = vld [vmem:[%s2 + $0xa8] sm:$0xff]
    %v135 = vld [vmem:[%s2 + $0xb0] sm:$0xff]
    %v136 = vld [vmem:[%s2 + $0xb8] sm:$0xff]
    %v137 = vld [vmem:[%s2 + $0xc0] sm:$0xff]
    %v138 = vld [vmem:[%s2 + $0xc8] sm:$0xff]
    %v139 = vld [vmem:[%s2 + $0xd0] sm:$0xff]
    %v140 = vld [vmem:[%s2 + $0xd8] sm:$0xff]
    %v141 = vld [vmem:[%s2 + $0xe0] sm:$0xff]
    %v142 = vld [vmem:[%s2 + $0xe8] sm:$0xff]
    %v143 = vld [vmem:[%s2 + $0xf0] sm:$0xff]
    %v144 = vld [vmem:[%s2 + $0xf8] sm:$0xff]
    %v145 = vld [vmem:[%s2 + $0x100] sm:$0xff]
    %v146 = vld [vmem:[%s2 + $0x108] sm:$0xff]
    %v147 = vld [vmem:[%s2 + $0x110] sm:$0xff]
    %v148 = vld [vmem:[%s2 + $0x118] sm:$0xff]
    %v149 = vld [vmem:[%s2 + $0x120] sm:$0xff]
    %v150 = vld [vmem:[%s2 + $0x128] sm:$0xff]
    %v151 = vld [vmem:[%s2 + $0x130] sm:$0xff]
    %v152 = vld [vmem:[%s2 + $0x138] sm:$0xff]
    %v153 = vld [vmem:[%s2 + $0x140] sm:$0xff]
    %v154 = vld [vmem:[%s2 + $0x148] sm:$0xff]
    %v155 = vld [vmem:[%s2 + $0x150] sm:$0xff]
    %v156 = vld [vmem:[%s2 + $0x158] sm:$0xff]
    %v157 = vld [vmem:[%s2 + $0x160] sm:$0xff]
    %v158 = vld [vmem:[%s2 + $0x168] sm:$0xff]
    %v159 = vld [vmem:[%s2 + $0x170] sm:$0xff]
    %v160 = vld [vmem:[%s2 + $0x178] sm:$0xff]
    %v161 = vld [vmem:[%s2 + $0x180] sm:$0xff]
    %v162 = vld [vmem:[%s2 + $0x188] sm:$0xff]
    %v163 = vld [vmem:[%s2 + $0x190] sm:$0xff]
    %v164 = vld [vmem:[%s2 + $0x198] sm:$0xff]
    %v165 = vld [vmem:[%s2 + $0x1a0] sm:$0xff]
    %v166 = vld [vmem:[%s2 + $0x1a8] sm:$0xff]
    %v167 = vld [vmem:[%s2 + $0x1b0] sm:$0xff]
    %v168 = vld [vmem:[%s2 + $0x1b8] sm:$0xff]
    %v169 = vld [vmem:[%s2 + $0x1c0] sm:$0xff]
    %v170 = vld [vmem:[%s2 + $0x1c8] sm:$0xff]
    %v171 = vld [vmem:[%s2 + $0x1d0] sm:$0xff]
    %v172 = vld [vmem:[%s2 + $0x1d8] sm:$0xff]
    %v173 = vld [vmem:[%s2 + $0x1e0] sm:$0xff]
    %v174 = vld [vmem:[%s2 + $0x1e8] sm:$0xff]
    %v175 = vld [vmem:[%s2 + $0x1f0] sm:$0xff]
    %v176 = vld [vmem:[%s2 + $0x1f8] sm:$0xff]
    %s177 = scalar_lea.vmem %s7, 1
    %v178 = vld [vmem:[%s177] ss:$8 sm:$0xf]
    %v179 = vld [vmem:[%s177] ss:$8 sm:$0xf0]
    %v180 = vor.u32 %v178, %v179
    %v182 = vperm.slane %v180, 0
    %v183 = vperm.slane %v180, 1
    %v184 = vperm.slane %v180, 2
    %v185 = vperm.slane %v180, 3
    %v186 = vperm.slane %v180, 4
    %v187 = vperm.slane %v180, 5
    %v188 = vperm.slane %v180, 6
    %v189 = vperm.slane %v180, 7
    %v262 = vunpack.c.l.b16 %v113
    %v263 = vunpack.c.h.b16 %v113
    %v264 = vunpack.c.l.b16 %v114
    %v265 = vunpack.c.h.b16 %v114
    %v266 = vunpack.c.l.b16 %v115
    %v267 = vunpack.c.h.b16 %v115
    %v268 = vunpack.c.l.b16 %v116
    %v269 = vunpack.c.h.b16 %v116
    %v270 = vunpack.c.l.b16 %v117
    %v271 = vunpack.c.h.b16 %v117
    %v272 = vunpack.c.l.b16 %v118
    %v273 = vunpack.c.h.b16 %v118
    %v274 = vunpack.c.l.b16 %v119
    %v275 = vunpack.c.h.b16 %v119
    %v276 = vunpack.c.l.b16 %v120
    %v277 = vunpack.c.h.b16 %v120
    %v278 = vunpack.c.l.b16 %v121
    %v279 = vunpack.c.h.b16 %v121
    %v280 = vunpack.c.l.b16 %v122
    %v281 = vunpack.c.h.b16 %v122
    %v282 = vunpack.c.l.b16 %v123
    %v283 = vunpack.c.h.b16 %v123
    %v284 = vunpack.c.l.b16 %v124
    %v285 = vunpack.c.h.b16 %v124
    %v286 = vunpack.c.l.b16 %v125
    %v287 = vunpack.c.h.b16 %v125
    %v288 = vunpack.c.l.b16 %v126
    %v289 = vunpack.c.h.b16 %v126
    %v290 = vunpack.c.l.b16 %v127
    %v291 = vunpack.c.h.b16 %v127
    %v292 = vunpack.c.l.b16 %v128
    %v293 = vunpack.c.h.b16 %v128
    %v294 = vunpack.c.l.b16 %v129
    %v295 = vunpack.c.h.b16 %v129
    %v296 = vunpack.c.l.b16 %v130
    %v297 = vunpack.c.h.b16 %v130
    %v298 = vunpack.c.l.b16 %v131
    %v299 = vunpack.c.h.b16 %v131
    %v300 = vunpack.c.l.b16 %v132
    %v301 = vunpack.c.h.b16 %v132
    %v302 = vunpack.c.l.b16 %v133
    %v303 = vunpack.c.h.b16 %v133
    %v304 = vunpack.c.l.b16 %v134
    %v305 = vunpack.c.h.b16 %v134
    %v306 = vunpack.c.l.b16 %v135
    %v307 = vunpack.c.h.b16 %v135
    %v308 = vunpack.c.l.b16 %v136
    %v309 = vunpack.c.h.b16 %v136
    %v310 = vunpack.c.l.b16 %v137
    %v311 = vunpack.c.h.b16 %v137
    %v312 = vunpack.c.l.b16 %v138
    %v313 = vunpack.c.h.b16 %v138
    %v314 = vunpack.c.l.b16 %v139
    %v315 = vunpack.c.h.b16 %v139
    %v316 = vunpack.c.l.b16 %v140
    %v317 = vunpack.c.h.b16 %v140
    %v318 = vunpack.c.l.b16 %v141
    %v319 = vunpack.c.h.b16 %v141
    %v320 = vunpack.c.l.b16 %v142
    %v321 = vunpack.c.h.b16 %v142
    %v322 = vunpack.c.l.b16 %v143
    %v323 = vunpack.c.h.b16 %v143
    %v324 = vunpack.c.l.b16 %v144
    %v325 = vunpack.c.h.b16 %v144
    %v326 = vunpack.c.l.b16 %v145
    %v327 = vunpack.c.h.b16 %v145
    %v328 = vunpack.c.l.b16 %v146
    %v329 = vunpack.c.h.b16 %v146
    %v330 = vunpack.c.l.b16 %v147
    %v331 = vunpack.c.h.b16 %v147
    %v332 = vunpack.c.l.b16 %v148
    %v333 = vunpack.c.h.b16 %v148
    %v334 = vunpack.c.l.b16 %v149
    %v335 = vunpack.c.h.b16 %v149
    %v336 = vunpack.c.l.b16 %v150
    %v337 = vunpack.c.h.b16 %v150
    %v338 = vunpack.c.l.b16 %v151
    %v339 = vunpack.c.h.b16 %v151
    %v340 = vunpack.c.l.b16 %v152
    %v341 = vunpack.c.h.b16 %v152
    %v342 = vunpack.c.l.b16 %v153
    %v343 = vunpack.c.h.b16 %v153
    %v344 = vunpack.c.l.b16 %v154
    %v345 = vunpack.c.h.b16 %v154
    %v346 = vunpack.c.l.b16 %v155
    %v347 = vunpack.c.h.b16 %v155
    %v348 = vunpack.c.l.b16 %v156
    %v349 = vunpack.c.h.b16 %v156
    %v350 = vunpack.c.l.b16 %v157
    %v351 = vunpack.c.h.b16 %v157
    %v352 = vunpack.c.l.b16 %v158
    %v353 = vunpack.c.h.b16 %v158
    %v354 = vunpack.c.l.b16 %v159
    %v355 = vunpack.c.h.b16 %v159
    %v356 = vunpack.c.l.b16 %v160
    %v357 = vunpack.c.h.b16 %v160
    %v358 = vunpack.c.l.b16 %v161
    %v359 = vunpack.c.h.b16 %v161
    %v360 = vunpack.c.l.b16 %v162
    %v361 = vunpack.c.h.b16 %v162
    %v362 = vunpack.c.l.b16 %v163
    %v363 = vunpack.c.h.b16 %v163
    %v364 = vunpack.c.l.b16 %v164
    %v365 = vunpack.c.h.b16 %v164
    %v366 = vunpack.c.l.b16 %v165
    %v367 = vunpack.c.h.b16 %v165
    %v368 = vunpack.c.l.b16 %v166
    %v369 = vunpack.c.h.b16 %v166
    %v370 = vunpack.c.l.b16 %v167
    %v371 = vunpack.c.h.b16 %v167
    %v372 = vunpack.c.l.b16 %v168
    %v373 = vunpack.c.h.b16 %v168
    %v374 = vunpack.c.l.b16 %v169
    %v375 = vunpack.c.h.b16 %v169
    %v376 = vunpack.c.l.b16 %v170
    %v377 = vunpack.c.h.b16 %v170
    %v378 = vunpack.c.l.b16 %v171
    %v379 = vunpack.c.h.b16 %v171
    %v380 = vunpack.c.l.b16 %v172
    %v381 = vunpack.c.h.b16 %v172
    %v382 = vunpack.c.l.b16 %v173
    %v383 = vunpack.c.h.b16 %v173
    %v384 = vunpack.c.l.b16 %v174
    %v385 = vunpack.c.h.b16 %v174
    %v386 = vunpack.c.l.b16 %v175
    %v387 = vunpack.c.h.b16 %v175
    %v388 = vunpack.c.l.b16 %v176
    %v389 = vunpack.c.h.b16 %v176
    %v390 = vpack.c.b16 %v270, %v262
    %v391 = vpack.c.b16 %v271, %v263
    %v392 = vpack.c.b16 %v272, %v264
    %v393 = vpack.c.b16 %v273, %v265
    %v394 = vpack.c.b16 %v274, %v266
    %v395 = vpack.c.b16 %v275, %v267
    %v396 = vpack.c.b16 %v276, %v268
    %v397 = vpack.c.b16 %v277, %v269
    %v398 = vpack.c.b16 %v286, %v278
    %v399 = vpack.c.b16 %v287, %v279
    %v400 = vpack.c.b16 %v288, %v280
    %v401 = vpack.c.b16 %v289, %v281
    %v402 = vpack.c.b16 %v290, %v282
    %v403 = vpack.c.b16 %v291, %v283
    %v404 = vpack.c.b16 %v292, %v284
    %v405 = vpack.c.b16 %v293, %v285
    %v406 = vpack.c.b16 %v302, %v294
    %v407 = vpack.c.b16 %v303, %v295
    %v408 = vpack.c.b16 %v304, %v296
    %v409 = vpack.c.b16 %v305, %v297
    %v410 = vpack.c.b16 %v306, %v298
    %v411 = vpack.c.b16 %v307, %v299
    %v412 = vpack.c.b16 %v308, %v300
    %v413 = vpack.c.b16 %v309, %v301
    %v414 = vpack.c.b16 %v318, %v310
    %v415 = vpack.c.b16 %v319, %v311
    %v416 = vpack.c.b16 %v320, %v312
    %v417 = vpack.c.b16 %v321, %v313
    %v418 = vpack.c.b16 %v322, %v314
    %v419 = vpack.c.b16 %v323, %v315
    %v420 = vpack.c.b16 %v324, %v316
    %v421 = vpack.c.b16 %v325, %v317
    %v422 = vpack.c.b16 %v334, %v326
    %v423 = vpack.c.b16 %v335, %v327
    %v424 = vpack.c.b16 %v336, %v328
    %v425 = vpack.c.b16 %v337, %v329
    %v426 = vpack.c.b16 %v338, %v330
    %v427 = vpack.c.b16 %v339, %v331
    %v428 = vpack.c.b16 %v340, %v332
    %v429 = vpack.c.b16 %v341, %v333
    %v430 = vpack.c.b16 %v350, %v342
    %v431 = vpack.c.b16 %v351, %v343
    %v432 = vpack.c.b16 %v352, %v344
    %v433 = vpack.c.b16 %v353, %v345
    %v434 = vpack.c.b16 %v354, %v346
    %v435 = vpack.c.b16 %v355, %v347
    %v436 = vpack.c.b16 %v356, %v348
    %v437 = vpack.c.b16 %v357, %v349
    %v438 = vpack.c.b16 %v366, %v358
    %v439 = vpack.c.b16 %v367, %v359
    %v440 = vpack.c.b16 %v368, %v360
    %v441 = vpack.c.b16 %v369, %v361
    %v442 = vpack.c.b16 %v370, %v362
    %v443 = vpack.c.b16 %v371, %v363
    %v444 = vpack.c.b16 %v372, %v364
    %v445 = vpack.c.b16 %v373, %v365
    %v446 = vpack.c.b16 %v382, %v374
    %v447 = vpack.c.b16 %v383, %v375
    %v448 = vpack.c.b16 %v384, %v376
    %v449 = vpack.c.b16 %v385, %v377
    %v450 = vpack.c.b16 %v386, %v378
    %v451 = vpack.c.b16 %v387, %v379
    %v452 = vpack.c.b16 %v388, %v380
    %v453 = vpack.c.b16 %v389, %v381
    %518 = vmatpush.bf16.msra.mxu0 %v446
    %519 = vmatpush.bf16.msra.mxu0 %v438
    %520 = vmatpush.bf16.msra.mxu0 %v430
    %521 = vmatpush.bf16.msra.mxu0 %v422
    %522 = vmatpush.bf16.msra.mxu0 %v414
    %523 = vmatpush.bf16.msra.mxu0 %v406
    %524 = vmatpush.bf16.msra.mxu0 %v398
    %525 = vmatpush.bf16.msra.mxu0 %v390
    %526 = vmatmul.bf16.gmra.mxu0 %v112
    %v527 = vpop.f32.mrf.mxu0
    %v528 = vadd.f32 %v182, %v527
    %v529 = vpop.f32.mrf.mxu0
    %530 = vdwg.mxu0
    %531 = vmatpush.bf16.msra.mxu0 %v447
    %532 = vmatpush.bf16.msra.mxu0 %v439
    %533 = vmatpush.bf16.msra.mxu0 %v431
    %534 = vmatpush.bf16.msra.mxu0 %v423
    %535 = vmatpush.bf16.msra.mxu0 %v415
    %536 = vmatpush.bf16.msra.mxu0 %v407
    %537 = vmatpush.bf16.msra.mxu0 %v399
    %538 = vmatpush.bf16.msra.mxu0 %v391
    %539 = vmatmul.bf16.gmra.mxu0 %v112
    %v540 = vpop.f32.mrf.mxu0
    %v541 = vadd.f32 %v183, %v540
    %v542 = vpop.f32.mrf.mxu0
    %543 = vdwg.mxu0
    %544 = vmatpush.bf16.msra.mxu0 %v448
    %545 = vmatpush.bf16.msra.mxu0 %v440
    %546 = vmatpush.bf16.msra.mxu0 %v432
    %547 = vmatpush.bf16.msra.mxu0 %v424
    %548 = vmatpush.bf16.msra.mxu0 %v416
    %549 = vmatpush.bf16.msra.mxu0 %v408
    %550 = vmatpush.bf16.msra.mxu0 %v400
    %551 = vmatpush.bf16.msra.mxu0 %v392
    %552 = vmatmul.bf16.gmra.mxu0 %v112
    %v553 = vpop.f32.mrf.mxu0
    %v554 = vadd.f32 %v184, %v553
    %v555 = vpop.f32.mrf.mxu0
    %556 = vdwg.mxu0
    %557 = vmatpush.bf16.msra.mxu0 %v449
    %558 = vmatpush.bf16.msra.mxu0 %v441
    %559 = vmatpush.bf16.msra.mxu0 %v433
    %560 = vmatpush.bf16.msra.mxu0 %v425
    %561 = vmatpush.bf16.msra.mxu0 %v417
    %562 = vmatpush.bf16.msra.mxu0 %v409
    %563 = vmatpush.bf16.msra.mxu0 %v401
    %564 = vmatpush.bf16.msra.mxu0 %v393
    %565 = vmatmul.bf16.gmra.mxu0 %v112
    %v566 = vpop.f32.mrf.mxu0
    %v567 = vadd.f32 %v185, %v566
    %v568 = vpop.f32.mrf.mxu0
    %569 = vdwg.mxu0
    %570 = vmatpush.bf16.msra.mxu0 %v450
    %571 = vmatpush.bf16.msra.mxu0 %v442
    %572 = vmatpush.bf16.msra.mxu0 %v434
    %573 = vmatpush.bf16.msra.mxu0 %v426
    %574 = vmatpush.bf16.msra.mxu0 %v418
    %575 = vmatpush.bf16.msra.mxu0 %v410
    %576 = vmatpush.bf16.msra.mxu0 %v402
    %577 = vmatpush.bf16.msra.mxu0 %v394
    %578 = vmatmul.bf16.gmra.mxu0 %v112
    %v579 = vpop.f32.mrf.mxu0
    %v580 = vadd.f32 %v186, %v579
    %v581 = vpop.f32.mrf.mxu0
    %582 = vdwg.mxu0
    %583 = vmatpush.bf16.msra.mxu0 %v451
    %584 = vmatpush.bf16.msra.mxu0 %v443
    %585 = vmatpush.bf16.msra.mxu0 %v435
    %586 = vmatpush.bf16.msra.mxu0 %v427
    %587 = vmatpush.bf16.msra.mxu0 %v419
    %588 = vmatpush.bf16.msra.mxu0 %v411
    %589 = vmatpush.bf16.msra.mxu0 %v403
    %590 = vmatpush.bf16.msra.mxu0 %v395
    %591 = vmatmul.bf16.gmra.mxu0 %v112
    %v592 = vpop.f32.mrf.mxu0
    %v593 = vadd.f32 %v187, %v592
    %v594 = vpop.f32.mrf.mxu0
    %595 = vdwg.mxu0
    %596 = vmatpush.bf16.msra.mxu0 %v452
    %597 = vmatpush.bf16.msra.mxu0 %v444
    %598 = vmatpush.bf16.msra.mxu0 %v436
    %599 = vmatpush.bf16.msra.mxu0 %v428
    %600 = vmatpush.bf16.msra.mxu0 %v420
    %601 = vmatpush.bf16.msra.mxu0 %v412
    %602 = vmatpush.bf16.msra.mxu0 %v404
    %603 = vmatpush.bf16.msra.mxu0 %v396
    %604 = vmatmul.bf16.gmra.mxu0 %v112
    %v605 = vpop.f32.mrf.mxu0
    %v606 = vadd.f32 %v188, %v605
    %v607 = vpop.f32.mrf.mxu0
    %608 = vdwg.mxu0
    %609 = vmatpush.bf16.msra.mxu0 %v453
    %610 = vmatpush.bf16.msra.mxu0 %v445
    %611 = vmatpush.bf16.msra.mxu0 %v437
    %612 = vmatpush.bf16.msra.mxu0 %v429
    %613 = vmatpush.bf16.msra.mxu0 %v421
    %614 = vmatpush.bf16.msra.mxu0 %v413
    %615 = vmatpush.bf16.msra.mxu0 %v405
    %616 = vmatpush.bf16.msra.mxu0 %v397
    %617 = vmatmul.bf16.gmra.mxu0 %v112
    %v618 = vpop.f32.mrf.mxu0
    %v619 = vadd.f32 %v189, %v618
    %v620 = vpop.f32.mrf.mxu0
    %621 = vdwg.mxu0
    %vm622 = vcmp.ge.f32.partialorder %v528, 0.0
    %vm623 = vcmp.ge.f32.partialorder %v541, 0.0
    %vm624 = vcmp.ge.f32.partialorder %v554, 0.0
    %vm625 = vcmp.ge.f32.partialorder %v567, 0.0
    %vm626 = vcmp.ge.f32.partialorder %v580, 0.0
    %vm627 = vcmp.ge.f32.partialorder %v593, 0.0
    %vm628 = vcmp.ge.f32.partialorder %v606, 0.0
    %vm629 = vcmp.ge.f32.partialorder %v619, 0.0
    %v630 = vmul.f32 %v528, 0.01
    %v631 = vmul.f32 %v541, 0.01
    %v632 = vmul.f32 %v554, 0.01
    %v633 = vmul.f32 %v567, 0.01
    %v634 = vmul.f32 %v580, 0.01
    %v635 = vmul.f32 %v593, 0.01
    %v636 = vmul.f32 %v606, 0.01
    %v637 = vmul.f32 %v619, 0.01
    %v638 = vsel %vm622, %v528, %v630
    %v639 = vsel %vm623, %v541, %v631
    %v640 = vsel %vm624, %v554, %v632
    %v641 = vsel %vm625, %v567, %v633
    %v642 = vsel %vm626, %v580, %v634
    %v643 = vsel %vm627, %v593, %v635
    %v644 = vsel %vm628, %v606, %v636
    %v645 = vsel %vm629, %v619, %v637
    %v646 = vpack.c.bf16 %v638, %v638
    %v647 = vpack.c.bf16 %v639, %v639
    %v648 = vpack.c.bf16 %v640, %v640
    %v649 = vpack.c.bf16 %v641, %v641
    %v650 = vpack.c.bf16 %v642, %v642
    %v651 = vpack.c.bf16 %v643, %v643
    %v652 = vpack.c.bf16 %v644, %v644
    %v653 = vpack.c.bf16 %v645, %v645
    %v654 = vld [vmem:[%s3] sm:$0xff]
    %v655 = vld [vmem:[%s3 + $0x8] sm:$0xff]
    %v656 = vld [vmem:[%s3 + $0x10] sm:$0xff]
    %v657 = vld [vmem:[%s3 + $0x18] sm:$0xff]
    %v658 = vld [vmem:[%s3 + $0x20] sm:$0xff]
    %v659 = vld [vmem:[%s3 + $0x28] sm:$0xff]
    %v660 = vld [vmem:[%s3 + $0x30] sm:$0xff]
    %v661 = vld [vmem:[%s3 + $0x38] sm:$0xff]
    %v662 = vld [vmem:[%s3 + $0x40] sm:$0xff]
    %v663 = vld [vmem:[%s3 + $0x48] sm:$0xff]
    %v664 = vld [vmem:[%s3 + $0x50] sm:$0xff]
    %v665 = vld [vmem:[%s3 + $0x58] sm:$0xff]
    %v666 = vld [vmem:[%s3 + $0x60] sm:$0xff]
    %v667 = vld [vmem:[%s3 + $0x68] sm:$0xff]
    %v668 = vld [vmem:[%s3 + $0x70] sm:$0xff]
    %v669 = vld [vmem:[%s3 + $0x78] sm:$0xff]
    %v670 = vld [vmem:[%s3 + $0x80] sm:$0xff]
    %v671 = vld [vmem:[%s3 + $0x88] sm:$0xff]
    %v672 = vld [vmem:[%s3 + $0x90] sm:$0xff]
    %v673 = vld [vmem:[%s3 + $0x98] sm:$0xff]
    %v674 = vld [vmem:[%s3 + $0xa0] sm:$0xff]
    %v675 = vld [vmem:[%s3 + $0xa8] sm:$0xff]
    %v676 = vld [vmem:[%s3 + $0xb0] sm:$0xff]
    %v677 = vld [vmem:[%s3 + $0xb8] sm:$0xff]
    %v678 = vld [vmem:[%s3 + $0xc0] sm:$0xff]
    %v679 = vld [vmem:[%s3 + $0xc8] sm:$0xff]
    %v680 = vld [vmem:[%s3 + $0xd0] sm:$0xff]
    %v681 = vld [vmem:[%s3 + $0xd8] sm:$0xff]
    %v682 = vld [vmem:[%s3 + $0xe0] sm:$0xff]
    %v683 = vld [vmem:[%s3 + $0xe8] sm:$0xff]
    %v684 = vld [vmem:[%s3 + $0xf0] sm:$0xff]
    %v685 = vld [vmem:[%s3 + $0xf8] sm:$0xff]
    %v686 = vld [vmem:[%s3 + $0x100] sm:$0xff]
    %v687 = vld [vmem:[%s3 + $0x108] sm:$0xff]
    %v688 = vld [vmem:[%s3 + $0x110] sm:$0xff]
    %v689 = vld [vmem:[%s3 + $0x118] sm:$0xff]
    %v690 = vld [vmem:[%s3 + $0x120] sm:$0xff]
    %v691 = vld [vmem:[%s3 + $0x128] sm:$0xff]
    %v692 = vld [vmem:[%s3 + $0x130] sm:$0xff]
    %v693 = vld [vmem:[%s3 + $0x138] sm:$0xff]
    %v694 = vld [vmem:[%s3 + $0x140] sm:$0xff]
    %v695 = vld [vmem:[%s3 + $0x148] sm:$0xff]
    %v696 = vld [vmem:[%s3 + $0x150] sm:$0xff]
    %v697 = vld [vmem:[%s3 + $0x158] sm:$0xff]
    %v698 = vld [vmem:[%s3 + $0x160] sm:$0xff]
    %v699 = vld [vmem:[%s3 + $0x168] sm:$0xff]
    %v700 = vld [vmem:[%s3 + $0x170] sm:$0xff]
    %v701 = vld [vmem:[%s3 + $0x178] sm:$0xff]
    %v702 = vld [vmem:[%s3 + $0x180] sm:$0xff]
    %v703 = vld [vmem:[%s3 + $0x188] sm:$0xff]
    %v704 = vld [vmem:[%s3 + $0x190] sm:$0xff]
    %v705 = vld [vmem:[%s3 + $0x198] sm:$0xff]
    %v706 = vld [vmem:[%s3 + $0x1a0] sm:$0xff]
    %v707 = vld [vmem:[%s3 + $0x1a8] sm:$0xff]
    %v708 = vld [vmem:[%s3 + $0x1b0] sm:$0xff]
    %v709 = vld [vmem:[%s3 + $0x1b8] sm:$0xff]
    %v710 = vld [vmem:[%s3 + $0x1c0] sm:$0xff]
    %v711 = vld [vmem:[%s3 + $0x1c8] sm:$0xff]
    %v712 = vld [vmem:[%s3 + $0x1d0] sm:$0xff]
    %v713 = vld [vmem:[%s3 + $0x1d8] sm:$0xff]
    %v714 = vld [vmem:[%s3 + $0x1e0] sm:$0xff]
    %v715 = vld [vmem:[%s3 + $0x1e8] sm:$0xff]
    %v716 = vld [vmem:[%s3 + $0x1f0] sm:$0xff]
    %v717 = vld [vmem:[%s3 + $0x1f8] sm:$0xff]
    %v718 = vld [vmem:[%s3 + $0x200] sm:$0xff]
    %v719 = vld [vmem:[%s3 + $0x208] sm:$0xff]
    %v720 = vld [vmem:[%s3 + $0x210] sm:$0xff]
    %v721 = vld [vmem:[%s3 + $0x218] sm:$0xff]
    %v722 = vld [vmem:[%s3 + $0x220] sm:$0xff]
    %v723 = vld [vmem:[%s3 + $0x228] sm:$0xff]
    %v724 = vld [vmem:[%s3 + $0x230] sm:$0xff]
    %v725 = vld [vmem:[%s3 + $0x238] sm:$0xff]
    %v726 = vld [vmem:[%s3 + $0x240] sm:$0xff]
    %v727 = vld [vmem:[%s3 + $0x248] sm:$0xff]
    %v728 = vld [vmem:[%s3 + $0x250] sm:$0xff]
    %v729 = vld [vmem:[%s3 + $0x258] sm:$0xff]
    %v730 = vld [vmem:[%s3 + $0x260] sm:$0xff]
    %v731 = vld [vmem:[%s3 + $0x268] sm:$0xff]
    %v732 = vld [vmem:[%s3 + $0x270] sm:$0xff]
    %v733 = vld [vmem:[%s3 + $0x278] sm:$0xff]
    %v734 = vld [vmem:[%s3 + $0x280] sm:$0xff]
    %v735 = vld [vmem:[%s3 + $0x288] sm:$0xff]
    %v736 = vld [vmem:[%s3 + $0x290] sm:$0xff]
    %v737 = vld [vmem:[%s3 + $0x298] sm:$0xff]
    %v738 = vld [vmem:[%s3 + $0x2a0] sm:$0xff]
    %v739 = vld [vmem:[%s3 + $0x2a8] sm:$0xff]
    %v740 = vld [vmem:[%s3 + $0x2b0] sm:$0xff]
    %v741 = vld [vmem:[%s3 + $0x2b8] sm:$0xff]
    %v742 = vld [vmem:[%s3 + $0x2c0] sm:$0xff]
    %v743 = vld [vmem:[%s3 + $0x2c8] sm:$0xff]
    %v744 = vld [vmem:[%s3 + $0x2d0] sm:$0xff]
    %v745 = vld [vmem:[%s3 + $0x2d8] sm:$0xff]
    %v746 = vld [vmem:[%s3 + $0x2e0] sm:$0xff]
    %v747 = vld [vmem:[%s3 + $0x2e8] sm:$0xff]
    %v748 = vld [vmem:[%s3 + $0x2f0] sm:$0xff]
    %v749 = vld [vmem:[%s3 + $0x2f8] sm:$0xff]
    %v750 = vld [vmem:[%s3 + $0x300] sm:$0xff]
    %v751 = vld [vmem:[%s3 + $0x308] sm:$0xff]
    %v752 = vld [vmem:[%s3 + $0x310] sm:$0xff]
    %v753 = vld [vmem:[%s3 + $0x318] sm:$0xff]
    %v754 = vld [vmem:[%s3 + $0x320] sm:$0xff]
    %v755 = vld [vmem:[%s3 + $0x328] sm:$0xff]
    %v756 = vld [vmem:[%s3 + $0x330] sm:$0xff]
    %v757 = vld [vmem:[%s3 + $0x338] sm:$0xff]
    %v758 = vld [vmem:[%s3 + $0x340] sm:$0xff]
    %v759 = vld [vmem:[%s3 + $0x348] sm:$0xff]
    %v760 = vld [vmem:[%s3 + $0x350] sm:$0xff]
    %v761 = vld [vmem:[%s3 + $0x358] sm:$0xff]
    %v762 = vld [vmem:[%s3 + $0x360] sm:$0xff]
    %v763 = vld [vmem:[%s3 + $0x368] sm:$0xff]
    %v764 = vld [vmem:[%s3 + $0x370] sm:$0xff]
    %v765 = vld [vmem:[%s3 + $0x378] sm:$0xff]
    %v766 = vld [vmem:[%s3 + $0x380] sm:$0xff]
    %v767 = vld [vmem:[%s3 + $0x388] sm:$0xff]
    %v768 = vld [vmem:[%s3 + $0x390] sm:$0xff]
    %v769 = vld [vmem:[%s3 + $0x398] sm:$0xff]
    %v770 = vld [vmem:[%s3 + $0x3a0] sm:$0xff]
    %v771 = vld [vmem:[%s3 + $0x3a8] sm:$0xff]
    %v772 = vld [vmem:[%s3 + $0x3b0] sm:$0xff]
    %v773 = vld [vmem:[%s3 + $0x3b8] sm:$0xff]
    %v774 = vld [vmem:[%s3 + $0x3c0] sm:$0xff]
    %v775 = vld [vmem:[%s3 + $0x3c8] sm:$0xff]
    %v776 = vld [vmem:[%s3 + $0x3d0] sm:$0xff]
    %v777 = vld [vmem:[%s3 + $0x3d8] sm:$0xff]
    %v778 = vld [vmem:[%s3 + $0x3e0] sm:$0xff]
    %v779 = vld [vmem:[%s3 + $0x3e8] sm:$0xff]
    %v780 = vld [vmem:[%s3 + $0x3f0] sm:$0xff]
    %v781 = vld [vmem:[%s3 + $0x3f8] sm:$0xff]
    %v782 = vld [vmem:[%s3 + $0x400] sm:$0xff]
    %v783 = vld [vmem:[%s3 + $0x408] sm:$0xff]
    %v784 = vld [vmem:[%s3 + $0x410] sm:$0xff]
    %v785 = vld [vmem:[%s3 + $0x418] sm:$0xff]
    %v786 = vld [vmem:[%s3 + $0x420] sm:$0xff]
    %v787 = vld [vmem:[%s3 + $0x428] sm:$0xff]
    %v788 = vld [vmem:[%s3 + $0x430] sm:$0xff]
    %v789 = vld [vmem:[%s3 + $0x438] sm:$0xff]
    %v790 = vld [vmem:[%s3 + $0x440] sm:$0xff]
    %v791 = vld [vmem:[%s3 + $0x448] sm:$0xff]
    %v792 = vld [vmem:[%s3 + $0x450] sm:$0xff]
    %v793 = vld [vmem:[%s3 + $0x458] sm:$0xff]
    %v794 = vld [vmem:[%s3 + $0x460] sm:$0xff]
    %v795 = vld [vmem:[%s3 + $0x468] sm:$0xff]
    %v796 = vld [vmem:[%s3 + $0x470] sm:$0xff]
    %v797 = vld [vmem:[%s3 + $0x478] sm:$0xff]
    %v798 = vld [vmem:[%s3 + $0x480] sm:$0xff]
    %v799 = vld [vmem:[%s3 + $0x488] sm:$0xff]
    %v800 = vld [vmem:[%s3 + $0x490] sm:$0xff]
    %v801 = vld [vmem:[%s3 + $0x498] sm:$0xff]
    %v802 = vld [vmem:[%s3 + $0x4a0] sm:$0xff]
    %v803 = vld [vmem:[%s3 + $0x4a8] sm:$0xff]
    %v804 = vld [vmem:[%s3 + $0x4b0] sm:$0xff]
    %v805 = vld [vmem:[%s3 + $0x4b8] sm:$0xff]
    %v806 = vld [vmem:[%s3 + $0x4c0] sm:$0xff]
    %v807 = vld [vmem:[%s3 + $0x4c8] sm:$0xff]
    %v808 = vld [vmem:[%s3 + $0x4d0] sm:$0xff]
    %v809 = vld [vmem:[%s3 + $0x4d8] sm:$0xff]
    %v810 = vld [vmem:[%s3 + $0x4e0] sm:$0xff]
    %v811 = vld [vmem:[%s3 + $0x4e8] sm:$0xff]
    %v812 = vld [vmem:[%s3 + $0x4f0] sm:$0xff]
    %v813 = vld [vmem:[%s3 + $0x4f8] sm:$0xff]
    %v814 = vld [vmem:[%s3 + $0x500] sm:$0xff]
    %v815 = vld [vmem:[%s3 + $0x508] sm:$0xff]
    %v816 = vld [vmem:[%s3 + $0x510] sm:$0xff]
    %v817 = vld [vmem:[%s3 + $0x518] sm:$0xff]
    %v818 = vld [vmem:[%s3 + $0x520] sm:$0xff]
    %v819 = vld [vmem:[%s3 + $0x528] sm:$0xff]
    %v820 = vld [vmem:[%s3 + $0x530] sm:$0xff]
    %v821 = vld [vmem:[%s3 + $0x538] sm:$0xff]
    %v822 = vld [vmem:[%s3 + $0x540] sm:$0xff]
    %v823 = vld [vmem:[%s3 + $0x548] sm:$0xff]
    %v824 = vld [vmem:[%s3 + $0x550] sm:$0xff]
    %v825 = vld [vmem:[%s3 + $0x558] sm:$0xff]
    %v826 = vld [vmem:[%s3 + $0x560] sm:$0xff]
    %v827 = vld [vmem:[%s3 + $0x568] sm:$0xff]
    %v828 = vld [vmem:[%s3 + $0x570] sm:$0xff]
    %v829 = vld [vmem:[%s3 + $0x578] sm:$0xff]
    %v830 = vld [vmem:[%s3 + $0x580] sm:$0xff]
    %v831 = vld [vmem:[%s3 + $0x588] sm:$0xff]
    %v832 = vld [vmem:[%s3 + $0x590] sm:$0xff]
    %v833 = vld [vmem:[%s3 + $0x598] sm:$0xff]
    %v834 = vld [vmem:[%s3 + $0x5a0] sm:$0xff]
    %v835 = vld [vmem:[%s3 + $0x5a8] sm:$0xff]
    %v836 = vld [vmem:[%s3 + $0x5b0] sm:$0xff]
    %v837 = vld [vmem:[%s3 + $0x5b8] sm:$0xff]
    %v838 = vld [vmem:[%s3 + $0x5c0] sm:$0xff]
    %v839 = vld [vmem:[%s3 + $0x5c8] sm:$0xff]
    %v840 = vld [vmem:[%s3 + $0x5d0] sm:$0xff]
    %v841 = vld [vmem:[%s3 + $0x5d8] sm:$0xff]
    %v842 = vld [vmem:[%s3 + $0x5e0] sm:$0xff]
    %v843 = vld [vmem:[%s3 + $0x5e8] sm:$0xff]
    %v844 = vld [vmem:[%s3 + $0x5f0] sm:$0xff]
    %v845 = vld [vmem:[%s3 + $0x5f8] sm:$0xff]
    %v846 = vld [vmem:[%s3 + $0x600] sm:$0xff]
    %v847 = vld [vmem:[%s3 + $0x608] sm:$0xff]
    %v848 = vld [vmem:[%s3 + $0x610] sm:$0xff]
    %v849 = vld [vmem:[%s3 + $0x618] sm:$0xff]
    %v850 = vld [vmem:[%s3 + $0x620] sm:$0xff]
    %v851 = vld [vmem:[%s3 + $0x628] sm:$0xff]
    %v852 = vld [vmem:[%s3 + $0x630] sm:$0xff]
    %v853 = vld [vmem:[%s3 + $0x638] sm:$0xff]
    %v854 = vld [vmem:[%s3 + $0x640] sm:$0xff]
    %v855 = vld [vmem:[%s3 + $0x648] sm:$0xff]
    %v856 = vld [vmem:[%s3 + $0x650] sm:$0xff]
    %v857 = vld [vmem:[%s3 + $0x658] sm:$0xff]
    %v858 = vld [vmem:[%s3 + $0x660] sm:$0xff]
    %v859 = vld [vmem:[%s3 + $0x668] sm:$0xff]
    %v860 = vld [vmem:[%s3 + $0x670] sm:$0xff]
    %v861 = vld [vmem:[%s3 + $0x678] sm:$0xff]
    %v862 = vld [vmem:[%s3 + $0x680] sm:$0xff]
    %v863 = vld [vmem:[%s3 + $0x688] sm:$0xff]
    %v864 = vld [vmem:[%s3 + $0x690] sm:$0xff]
    %v865 = vld [vmem:[%s3 + $0x698] sm:$0xff]
    %v866 = vld [vmem:[%s3 + $0x6a0] sm:$0xff]
    %v867 = vld [vmem:[%s3 + $0x6a8] sm:$0xff]
    %v868 = vld [vmem:[%s3 + $0x6b0] sm:$0xff]
    %v869 = vld [vmem:[%s3 + $0x6b8] sm:$0xff]
    %v870 = vld [vmem:[%s3 + $0x6c0] sm:$0xff]
    %v871 = vld [vmem:[%s3 + $0x6c8] sm:$0xff]
    %v872 = vld [vmem:[%s3 + $0x6d0] sm:$0xff]
    %v873 = vld [vmem:[%s3 + $0x6d8] sm:$0xff]
    %v874 = vld [vmem:[%s3 + $0x6e0] sm:$0xff]
    %v875 = vld [vmem:[%s3 + $0x6e8] sm:$0xff]
    %v876 = vld [vmem:[%s3 + $0x6f0] sm:$0xff]
    %v877 = vld [vmem:[%s3 + $0x6f8] sm:$0xff]
    %v878 = vld [vmem:[%s3 + $0x700] sm:$0xff]
    %v879 = vld [vmem:[%s3 + $0x708] sm:$0xff]
    %v880 = vld [vmem:[%s3 + $0x710] sm:$0xff]
    %v881 = vld [vmem:[%s3 + $0x718] sm:$0xff]
    %v882 = vld [vmem:[%s3 + $0x720] sm:$0xff]
    %v883 = vld [vmem:[%s3 + $0x728] sm:$0xff]
    %v884 = vld [vmem:[%s3 + $0x730] sm:$0xff]
    %v885 = vld [vmem:[%s3 + $0x738] sm:$0xff]
    %v886 = vld [vmem:[%s3 + $0x740] sm:$0xff]
    %v887 = vld [vmem:[%s3 + $0x748] sm:$0xff]
    %v888 = vld [vmem:[%s3 + $0x750] sm:$0xff]
    %v889 = vld [vmem:[%s3 + $0x758] sm:$0xff]
    %v890 = vld [vmem:[%s3 + $0x760] sm:$0xff]
    %v891 = vld [vmem:[%s3 + $0x768] sm:$0xff]
    %v892 = vld [vmem:[%s3 + $0x770] sm:$0xff]
    %v893 = vld [vmem:[%s3 + $0x778] sm:$0xff]
    %v894 = vld [vmem:[%s3 + $0x780] sm:$0xff]
    %v895 = vld [vmem:[%s3 + $0x788] sm:$0xff]
    %v896 = vld [vmem:[%s3 + $0x790] sm:$0xff]
    %v897 = vld [vmem:[%s3 + $0x798] sm:$0xff]
    %v898 = vld [vmem:[%s3 + $0x7a0] sm:$0xff]
    %v899 = vld [vmem:[%s3 + $0x7a8] sm:$0xff]
    %v900 = vld [vmem:[%s3 + $0x7b0] sm:$0xff]
    %v901 = vld [vmem:[%s3 + $0x7b8] sm:$0xff]
    %v902 = vld [vmem:[%s3 + $0x7c0] sm:$0xff]
    %v903 = vld [vmem:[%s3 + $0x7c8] sm:$0xff]
    %v904 = vld [vmem:[%s3 + $0x7d0] sm:$0xff]
    %v905 = vld [vmem:[%s3 + $0x7d8] sm:$0xff]
    %v906 = vld [vmem:[%s3 + $0x7e0] sm:$0xff]
    %v907 = vld [vmem:[%s3 + $0x7e8] sm:$0xff]
    %v908 = vld [vmem:[%s3 + $0x7f0] sm:$0xff]
    %v909 = vld [vmem:[%s3 + $0x7f8] sm:$0xff]
    %s910 = scalar_lea.vmem %s7, 2
    %v911 = vld [vmem:[%s910] ss:$8 sm:$0xf]
    %v913 = vperm.slane %v911, 0
    %v914 = vperm.slane %v911, 1
    %v915 = vperm.slane %v911, 2
    %v916 = vperm.slane %v911, 3
    %v1177 = vunpack.c.l.b16 %v654
    %v1178 = vunpack.c.h.b16 %v654
    %v1179 = vunpack.c.l.b16 %v655
    %v1180 = vunpack.c.h.b16 %v655
    %v1181 = vunpack.c.l.b16 %v656
    %v1182 = vunpack.c.h.b16 %v656
    %v1183 = vunpack.c.l.b16 %v657
    %v1184 = vunpack.c.h.b16 %v657
    %v1185 = vunpack.c.l.b16 %v658
    %v1186 = vunpack.c.h.b16 %v658
    %v1187 = vunpack.c.l.b16 %v659
    %v1188 = vunpack.c.h.b16 %v659
    %v1189 = vunpack.c.l.b16 %v660
    %v1190 = vunpack.c.h.b16 %v660
    %v1191 = vunpack.c.l.b16 %v661
    %v1192 = vunpack.c.h.b16 %v661
    %v1193 = vunpack.c.l.b16 %v662
    %v1194 = vunpack.c.h.b16 %v662
    %v1195 = vunpack.c.l.b16 %v663
    %v1196 = vunpack.c.h.b16 %v663
    %v1197 = vunpack.c.l.b16 %v664
    %v1198 = vunpack.c.h.b16 %v664
    %v1199 = vunpack.c.l.b16 %v665
    %v1200 = vunpack.c.h.b16 %v665
    %v1201 = vunpack.c.l.b16 %v666
    %v1202 = vunpack.c.h.b16 %v666
    %v1203 = vunpack.c.l.b16 %v667
    %v1204 = vunpack.c.h.b16 %v667
    %v1205 = vunpack.c.l.b16 %v668
    %v1206 = vunpack.c.h.b16 %v668
    %v1207 = vunpack.c.l.b16 %v669
    %v1208 = vunpack.c.h.b16 %v669
    %v1209 = vunpack.c.l.b16 %v670
    %v1210 = vunpack.c.h.b16 %v670
    %v1211 = vunpack.c.l.b16 %v671
    %v1212 = vunpack.c.h.b16 %v671
    %v1213 = vunpack.c.l.b16 %v672
    %v1214 = vunpack.c.h.b16 %v672
    %v1215 = vunpack.c.l.b16 %v673
    %v1216 = vunpack.c.h.b16 %v673
    %v1217 = vunpack.c.l.b16 %v674
    %v1218 = vunpack.c.h.b16 %v674
    %v1219 = vunpack.c.l.b16 %v675
    %v1220 = vunpack.c.h.b16 %v675
    %v1221 = vunpack.c.l.b16 %v676
    %v1222 = vunpack.c.h.b16 %v676
    %v1223 = vunpack.c.l.b16 %v677
    %v1224 = vunpack.c.h.b16 %v677
    %v1225 = vunpack.c.l.b16 %v678
    %v1226 = vunpack.c.h.b16 %v678
    %v1227 = vunpack.c.l.b16 %v679
    %v1228 = vunpack.c.h.b16 %v679
    %v1229 = vunpack.c.l.b16 %v680
    %v1230 = vunpack.c.h.b16 %v680
    %v1231 = vunpack.c.l.b16 %v681
    %v1232 = vunpack.c.h.b16 %v681
    %v1233 = vunpack.c.l.b16 %v682
    %v1234 = vunpack.c.h.b16 %v682
    %v1235 = vunpack.c.l.b16 %v683
    %v1236 = vunpack.c.h.b16 %v683
    %v1237 = vunpack.c.l.b16 %v684
    %v1238 = vunpack.c.h.b16 %v684
    %v1239 = vunpack.c.l.b16 %v685
    %v1240 = vunpack.c.h.b16 %v685
    %v1241 = vunpack.c.l.b16 %v686
    %v1242 = vunpack.c.h.b16 %v686
    %v1243 = vunpack.c.l.b16 %v687
    %v1244 = vunpack.c.h.b16 %v687
    %v1245 = vunpack.c.l.b16 %v688
    %v1246 = vunpack.c.h.b16 %v688
    %v1247 = vunpack.c.l.b16 %v689
    %v1248 = vunpack.c.h.b16 %v689
    %v1249 = vunpack.c.l.b16 %v690
    %v1250 = vunpack.c.h.b16 %v690
    %v1251 = vunpack.c.l.b16 %v691
    %v1252 = vunpack.c.h.b16 %v691
    %v1253 = vunpack.c.l.b16 %v692
    %v1254 = vunpack.c.h.b16 %v692
    %v1255 = vunpack.c.l.b16 %v693
    %v1256 = vunpack.c.h.b16 %v693
    %v1257 = vunpack.c.l.b16 %v694
    %v1258 = vunpack.c.h.b16 %v694
    %v1259 = vunpack.c.l.b16 %v695
    %v1260 = vunpack.c.h.b16 %v695
    %v1261 = vunpack.c.l.b16 %v696
    %v1262 = vunpack.c.h.b16 %v696
    %v1263 = vunpack.c.l.b16 %v697
    %v1264 = vunpack.c.h.b16 %v697
    %v1265 = vunpack.c.l.b16 %v698
    %v1266 = vunpack.c.h.b16 %v698
    %v1267 = vunpack.c.l.b16 %v699
    %v1268 = vunpack.c.h.b16 %v699
    %v1269 = vunpack.c.l.b16 %v700
    %v1270 = vunpack.c.h.b16 %v700
    %v1271 = vunpack.c.l.b16 %v701
    %v1272 = vunpack.c.h.b16 %v701
    %v1273 = vunpack.c.l.b16 %v702
    %v1274 = vunpack.c.h.b16 %v702
    %v1275 = vunpack.c.l.b16 %v703
    %v1276 = vunpack.c.h.b16 %v703
    %v1277 = vunpack.c.l.b16 %v704
    %v1278 = vunpack.c.h.b16 %v704
    %v1279 = vunpack.c.l.b16 %v705
    %v1280 = vunpack.c.h.b16 %v705
    %v1281 = vunpack.c.l.b16 %v706
    %v1282 = vunpack.c.h.b16 %v706
    %v1283 = vunpack.c.l.b16 %v707
    %v1284 = vunpack.c.h.b16 %v707
    %v1285 = vunpack.c.l.b16 %v708
    %v1286 = vunpack.c.h.b16 %v708
    %v1287 = vunpack.c.l.b16 %v709
    %v1288 = vunpack.c.h.b16 %v709
    %v1289 = vunpack.c.l.b16 %v710
    %v1290 = vunpack.c.h.b16 %v710
    %v1291 = vunpack.c.l.b16 %v711
    %v1292 = vunpack.c.h.b16 %v711
    %v1293 = vunpack.c.l.b16 %v712
    %v1294 = vunpack.c.h.b16 %v712
    %v1295 = vunpack.c.l.b16 %v713
    %v1296 = vunpack.c.h.b16 %v713
    %v1297 = vunpack.c.l.b16 %v714
    %v1298 = vunpack.c.h.b16 %v714
    %v1299 = vunpack.c.l.b16 %v715
    %v1300 = vunpack.c.h.b16 %v715
    %v1301 = vunpack.c.l.b16 %v716
    %v1302 = vunpack.c.h.b16 %v716
    %v1303 = vunpack.c.l.b16 %v717
    %v1304 = vunpack.c.h.b16 %v717
    %v1305 = vunpack.c.l.b16 %v718
    %v1306 = vunpack.c.h.b16 %v718
    %v1307 = vunpack.c.l.b16 %v719
    %v1308 = vunpack.c.h.b16 %v719
    %v1309 = vunpack.c.l.b16 %v720
    %v1310 = vunpack.c.h.b16 %v720
    %v1311 = vunpack.c.l.b16 %v721
    %v1312 = vunpack.c.h.b16 %v721
    %v1313 = vunpack.c.l.b16 %v722
    %v1314 = vunpack.c.h.b16 %v722
    %v1315 = vunpack.c.l.b16 %v723
    %v1316 = vunpack.c.h.b16 %v723
    %v1317 = vunpack.c.l.b16 %v724
    %v1318 = vunpack.c.h.b16 %v724
    %v1319 = vunpack.c.l.b16 %v725
    %v1320 = vunpack.c.h.b16 %v725
    %v1321 = vunpack.c.l.b16 %v726
    %v1322 = vunpack.c.h.b16 %v726
    %v1323 = vunpack.c.l.b16 %v727
    %v1324 = vunpack.c.h.b16 %v727
    %v1325 = vunpack.c.l.b16 %v728
    %v1326 = vunpack.c.h.b16 %v728
    %v1327 = vunpack.c.l.b16 %v729
    %v1328 = vunpack.c.h.b16 %v729
    %v1329 = vunpack.c.l.b16 %v730
    %v1330 = vunpack.c.h.b16 %v730
    %v1331 = vunpack.c.l.b16 %v731
    %v1332 = vunpack.c.h.b16 %v731
    %v1333 = vunpack.c.l.b16 %v732
    %v1334 = vunpack.c.h.b16 %v732
    %v1335 = vunpack.c.l.b16 %v733
    %v1336 = vunpack.c.h.b16 %v733
    %v1337 = vunpack.c.l.b16 %v734
    %v1338 = vunpack.c.h.b16 %v734
    %v1339 = vunpack.c.l.b16 %v735
    %v1340 = vunpack.c.h.b16 %v735
    %v1341 = vunpack.c.l.b16 %v736
    %v1342 = vunpack.c.h.b16 %v736
    %v1343 = vunpack.c.l.b16 %v737
    %v1344 = vunpack.c.h.b16 %v737
    %v1345 = vunpack.c.l.b16 %v738
    %v1346 = vunpack.c.h.b16 %v738
    %v1347 = vunpack.c.l.b16 %v739
    %v1348 = vunpack.c.h.b16 %v739
    %v1349 = vunpack.c.l.b16 %v740
    %v1350 = vunpack.c.h.b16 %v740
    %v1351 = vunpack.c.l.b16 %v741
    %v1352 = vunpack.c.h.b16 %v741
    %v1353 = vunpack.c.l.b16 %v742
    %v1354 = vunpack.c.h.b16 %v742
    %v1355 = vunpack.c.l.b16 %v743
    %v1356 = vunpack.c.h.b16 %v743
    %v1357 = vunpack.c.l.b16 %v744
    %v1358 = vunpack.c.h.b16 %v744
    %v1359 = vunpack.c.l.b16 %v745
    %v1360 = vunpack.c.h.b16 %v745
    %v1361 = vunpack.c.l.b16 %v746
    %v1362 = vunpack.c.h.b16 %v746
    %v1363 = vunpack.c.l.b16 %v747
    %v1364 = vunpack.c.h.b16 %v747
    %v1365 = vunpack.c.l.b16 %v748
    %v1366 = vunpack.c.h.b16 %v748
    %v1367 = vunpack.c.l.b16 %v749
    %v1368 = vunpack.c.h.b16 %v749
    %v1369 = vunpack.c.l.b16 %v750
    %v1370 = vunpack.c.h.b16 %v750
    %v1371 = vunpack.c.l.b16 %v751
    %v1372 = vunpack.c.h.b16 %v751
    %v1373 = vunpack.c.l.b16 %v752
    %v1374 = vunpack.c.h.b16 %v752
    %v1375 = vunpack.c.l.b16 %v753
    %v1376 = vunpack.c.h.b16 %v753
    %v1377 = vunpack.c.l.b16 %v754
    %v1378 = vunpack.c.h.b16 %v754
    %v1379 = vunpack.c.l.b16 %v755
    %v1380 = vunpack.c.h.b16 %v755
    %v1381 = vunpack.c.l.b16 %v756
    %v1382 = vunpack.c.h.b16 %v756
    %v1383 = vunpack.c.l.b16 %v757
    %v1384 = vunpack.c.h.b16 %v757
    %v1385 = vunpack.c.l.b16 %v758
    %v1386 = vunpack.c.h.b16 %v758
    %v1387 = vunpack.c.l.b16 %v759
    %v1388 = vunpack.c.h.b16 %v759
    %v1389 = vunpack.c.l.b16 %v760
    %v1390 = vunpack.c.h.b16 %v760
    %v1391 = vunpack.c.l.b16 %v761
    %v1392 = vunpack.c.h.b16 %v761
    %v1393 = vunpack.c.l.b16 %v762
    %v1394 = vunpack.c.h.b16 %v762
    %v1395 = vunpack.c.l.b16 %v763
    %v1396 = vunpack.c.h.b16 %v763
    %v1397 = vunpack.c.l.b16 %v764
    %v1398 = vunpack.c.h.b16 %v764
    %v1399 = vunpack.c.l.b16 %v765
    %v1400 = vunpack.c.h.b16 %v765
    %v1401 = vunpack.c.l.b16 %v766
    %v1402 = vunpack.c.h.b16 %v766
    %v1403 = vunpack.c.l.b16 %v767
    %v1404 = vunpack.c.h.b16 %v767
    %v1405 = vunpack.c.l.b16 %v768
    %v1406 = vunpack.c.h.b16 %v768
    %v1407 = vunpack.c.l.b16 %v769
    %v1408 = vunpack.c.h.b16 %v769
    %v1409 = vunpack.c.l.b16 %v770
    %v1410 = vunpack.c.h.b16 %v770
    %v1411 = vunpack.c.l.b16 %v771
    %v1412 = vunpack.c.h.b16 %v771
    %v1413 = vunpack.c.l.b16 %v772
    %v1414 = vunpack.c.h.b16 %v772
    %v1415 = vunpack.c.l.b16 %v773
    %v1416 = vunpack.c.h.b16 %v773
    %v1417 = vunpack.c.l.b16 %v774
    %v1418 = vunpack.c.h.b16 %v774
    %v1419 = vunpack.c.l.b16 %v775
    %v1420 = vunpack.c.h.b16 %v775
    %v1421 = vunpack.c.l.b16 %v776
    %v1422 = vunpack.c.h.b16 %v776
    %v1423 = vunpack.c.l.b16 %v777
    %v1424 = vunpack.c.h.b16 %v777
    %v1425 = vunpack.c.l.b16 %v778
    %v1426 = vunpack.c.h.b16 %v778
    %v1427 = vunpack.c.l.b16 %v779
    %v1428 = vunpack.c.h.b16 %v779
    %v1429 = vunpack.c.l.b16 %v780
    %v1430 = vunpack.c.h.b16 %v780
    %v1431 = vunpack.c.l.b16 %v781
    %v1432 = vunpack.c.h.b16 %v781
    %v1433 = vunpack.c.l.b16 %v782
    %v1434 = vunpack.c.h.b16 %v782
    %v1435 = vunpack.c.l.b16 %v783
    %v1436 = vunpack.c.h.b16 %v783
    %v1437 = vunpack.c.l.b16 %v784
    %v1438 = vunpack.c.h.b16 %v784
    %v1439 = vunpack.c.l.b16 %v785
    %v1440 = vunpack.c.h.b16 %v785
    %v1441 = vunpack.c.l.b16 %v786
    %v1442 = vunpack.c.h.b16 %v786
    %v1443 = vunpack.c.l.b16 %v787
    %v1444 = vunpack.c.h.b16 %v787
    %v1445 = vunpack.c.l.b16 %v788
    %v1446 = vunpack.c.h.b16 %v788
    %v1447 = vunpack.c.l.b16 %v789
    %v1448 = vunpack.c.h.b16 %v789
    %v1449 = vunpack.c.l.b16 %v790
    %v1450 = vunpack.c.h.b16 %v790
    %v1451 = vunpack.c.l.b16 %v791
    %v1452 = vunpack.c.h.b16 %v791
    %v1453 = vunpack.c.l.b16 %v792
    %v1454 = vunpack.c.h.b16 %v792
    %v1455 = vunpack.c.l.b16 %v793
    %v1456 = vunpack.c.h.b16 %v793
    %v1457 = vunpack.c.l.b16 %v794
    %v1458 = vunpack.c.h.b16 %v794
    %v1459 = vunpack.c.l.b16 %v795
    %v1460 = vunpack.c.h.b16 %v795
    %v1461 = vunpack.c.l.b16 %v796
    %v1462 = vunpack.c.h.b16 %v796
    %v1463 = vunpack.c.l.b16 %v797
    %v1464 = vunpack.c.h.b16 %v797
    %v1465 = vunpack.c.l.b16 %v798
    %v1466 = vunpack.c.h.b16 %v798
    %v1467 = vunpack.c.l.b16 %v799
    %v1468 = vunpack.c.h.b16 %v799
    %v1469 = vunpack.c.l.b16 %v800
    %v1470 = vunpack.c.h.b16 %v800
    %v1471 = vunpack.c.l.b16 %v801
    %v1472 = vunpack.c.h.b16 %v801
    %v1473 = vunpack.c.l.b16 %v802
    %v1474 = vunpack.c.h.b16 %v802
    %v1475 = vunpack.c.l.b16 %v803
    %v1476 = vunpack.c.h.b16 %v803
    %v1477 = vunpack.c.l.b16 %v804
    %v1478 = vunpack.c.h.b16 %v804
    %v1479 = vunpack.c.l.b16 %v805
    %v1480 = vunpack.c.h.b16 %v805
    %v1481 = vunpack.c.l.b16 %v806
    %v1482 = vunpack.c.h.b16 %v806
    %v1483 = vunpack.c.l.b16 %v807
    %v1484 = vunpack.c.h.b16 %v807
    %v1485 = vunpack.c.l.b16 %v808
    %v1486 = vunpack.c.h.b16 %v808
    %v1487 = vunpack.c.l.b16 %v809
    %v1488 = vunpack.c.h.b16 %v809
    %v1489 = vunpack.c.l.b16 %v810
    %v1490 = vunpack.c.h.b16 %v810
    %v1491 = vunpack.c.l.b16 %v811
    %v1492 = vunpack.c.h.b16 %v811
    %v1493 = vunpack.c.l.b16 %v812
    %v1494 = vunpack.c.h.b16 %v812
    %v1495 = vunpack.c.l.b16 %v813
    %v1496 = vunpack.c.h.b16 %v813
    %v1497 = vunpack.c.l.b16 %v814
    %v1498 = vunpack.c.h.b16 %v814
    %v1499 = vunpack.c.l.b16 %v815
    %v1500 = vunpack.c.h.b16 %v815
    %v1501 = vunpack.c.l.b16 %v816
    %v1502 = vunpack.c.h.b16 %v816
    %v1503 = vunpack.c.l.b16 %v817
    %v1504 = vunpack.c.h.b16 %v817
    %v1505 = vunpack.c.l.b16 %v818
    %v1506 = vunpack.c.h.b16 %v818
    %v1507 = vunpack.c.l.b16 %v819
    %v1508 = vunpack.c.h.b16 %v819
    %v1509 = vunpack.c.l.b16 %v820
    %v1510 = vunpack.c.h.b16 %v820
    %v1511 = vunpack.c.l.b16 %v821
    %v1512 = vunpack.c.h.b16 %v821
    %v1513 = vunpack.c.l.b16 %v822
    %v1514 = vunpack.c.h.b16 %v822
    %v1515 = vunpack.c.l.b16 %v823
    %v1516 = vunpack.c.h.b16 %v823
    %v1517 = vunpack.c.l.b16 %v824
    %v1518 = vunpack.c.h.b16 %v824
    %v1519 = vunpack.c.l.b16 %v825
    %v1520 = vunpack.c.h.b16 %v825
    %v1521 = vunpack.c.l.b16 %v826
    %v1522 = vunpack.c.h.b16 %v826
    %v1523 = vunpack.c.l.b16 %v827
    %v1524 = vunpack.c.h.b16 %v827
    %v1525 = vunpack.c.l.b16 %v828
    %v1526 = vunpack.c.h.b16 %v828
    %v1527 = vunpack.c.l.b16 %v829
    %v1528 = vunpack.c.h.b16 %v829
    %v1529 = vunpack.c.l.b16 %v830
    %v1530 = vunpack.c.h.b16 %v830
    %v1531 = vunpack.c.l.b16 %v831
    %v1532 = vunpack.c.h.b16 %v831
    %v1533 = vunpack.c.l.b16 %v832
    %v1534 = vunpack.c.h.b16 %v832
    %v1535 = vunpack.c.l.b16 %v833
    %v1536 = vunpack.c.h.b16 %v833
    %v1537 = vunpack.c.l.b16 %v834
    %v1538 = vunpack.c.h.b16 %v834
    %v1539 = vunpack.c.l.b16 %v835
    %v1540 = vunpack.c.h.b16 %v835
    %v1541 = vunpack.c.l.b16 %v836
    %v1542 = vunpack.c.h.b16 %v836
    %v1543 = vunpack.c.l.b16 %v837
    %v1544 = vunpack.c.h.b16 %v837
    %v1545 = vunpack.c.l.b16 %v838
    %v1546 = vunpack.c.h.b16 %v838
    %v1547 = vunpack.c.l.b16 %v839
    %v1548 = vunpack.c.h.b16 %v839
    %v1549 = vunpack.c.l.b16 %v840
    %v1550 = vunpack.c.h.b16 %v840
    %v1551 = vunpack.c.l.b16 %v841
    %v1552 = vunpack.c.h.b16 %v841
    %v1553 = vunpack.c.l.b16 %v842
    %v1554 = vunpack.c.h.b16 %v842
    %v1555 = vunpack.c.l.b16 %v843
    %v1556 = vunpack.c.h.b16 %v843
    %v1557 = vunpack.c.l.b16 %v844
    %v1558 = vunpack.c.h.b16 %v844
    %v1559 = vunpack.c.l.b16 %v845
    %v1560 = vunpack.c.h.b16 %v845
    %v1561 = vunpack.c.l.b16 %v846
    %v1562 = vunpack.c.h.b16 %v846
    %v1563 = vunpack.c.l.b16 %v847
    %v1564 = vunpack.c.h.b16 %v847
    %v1565 = vunpack.c.l.b16 %v848
    %v1566 = vunpack.c.h.b16 %v848
    %v1567 = vunpack.c.l.b16 %v849
    %v1568 = vunpack.c.h.b16 %v849
    %v1569 = vunpack.c.l.b16 %v850
    %v1570 = vunpack.c.h.b16 %v850
    %v1571 = vunpack.c.l.b16 %v851
    %v1572 = vunpack.c.h.b16 %v851
    %v1573 = vunpack.c.l.b16 %v852
    %v1574 = vunpack.c.h.b16 %v852
    %v1575 = vunpack.c.l.b16 %v853
    %v1576 = vunpack.c.h.b16 %v853
    %v1577 = vunpack.c.l.b16 %v854
    %v1578 = vunpack.c.h.b16 %v854
    %v1579 = vunpack.c.l.b16 %v855
    %v1580 = vunpack.c.h.b16 %v855
    %v1581 = vunpack.c.l.b16 %v856
    %v1582 = vunpack.c.h.b16 %v856
    %v1583 = vunpack.c.l.b16 %v857
    %v1584 = vunpack.c.h.b16 %v857
    %v1585 = vunpack.c.l.b16 %v858
    %v1586 = vunpack.c.h.b16 %v858
    %v1587 = vunpack.c.l.b16 %v859
    %v1588 = vunpack.c.h.b16 %v859
    %v1589 = vunpack.c.l.b16 %v860
    %v1590 = vunpack.c.h.b16 %v860
    %v1591 = vunpack.c.l.b16 %v861
    %v1592 = vunpack.c.h.b16 %v861
    %v1593 = vunpack.c.l.b16 %v862
    %v1594 = vunpack.c.h.b16 %v862
    %v1595 = vunpack.c.l.b16 %v863
    %v1596 = vunpack.c.h.b16 %v863
    %v1597 = vunpack.c.l.b16 %v864
    %v1598 = vunpack.c.h.b16 %v864
    %v1599 = vunpack.c.l.b16 %v865
    %v1600 = vunpack.c.h.b16 %v865
    %v1601 = vunpack.c.l.b16 %v866
    %v1602 = vunpack.c.h.b16 %v866
    %v1603 = vunpack.c.l.b16 %v867
    %v1604 = vunpack.c.h.b16 %v867
    %v1605 = vunpack.c.l.b16 %v868
    %v1606 = vunpack.c.h.b16 %v868
    %v1607 = vunpack.c.l.b16 %v869
    %v1608 = vunpack.c.h.b16 %v869
    %v1609 = vunpack.c.l.b16 %v870
    %v1610 = vunpack.c.h.b16 %v870
    %v1611 = vunpack.c.l.b16 %v871
    %v1612 = vunpack.c.h.b16 %v871
    %v1613 = vunpack.c.l.b16 %v872
    %v1614 = vunpack.c.h.b16 %v872
    %v1615 = vunpack.c.l.b16 %v873
    %v1616 = vunpack.c.h.b16 %v873
    %v1617 = vunpack.c.l.b16 %v874
    %v1618 = vunpack.c.h.b16 %v874
    %v1619 = vunpack.c.l.b16 %v875
    %v1620 = vunpack.c.h.b16 %v875
    %v1621 = vunpack.c.l.b16 %v876
    %v1622 = vunpack.c.h.b16 %v876
    %v1623 = vunpack.c.l.b16 %v877
    %v1624 = vunpack.c.h.b16 %v877
    %v1625 = vunpack.c.l.b16 %v878
    %v1626 = vunpack.c.h.b16 %v878
    %v1627 = vunpack.c.l.b16 %v879
    %v1628 = vunpack.c.h.b16 %v879
    %v1629 = vunpack.c.l.b16 %v880
    %v1630 = vunpack.c.h.b16 %v880
    %v1631 = vunpack.c.l.b16 %v881
    %v1632 = vunpack.c.h.b16 %v881
    %v1633 = vunpack.c.l.b16 %v882
    %v1634 = vunpack.c.h.b16 %v882
    %v1635 = vunpack.c.l.b16 %v883
    %v1636 = vunpack.c.h.b16 %v883
    %v1637 = vunpack.c.l.b16 %v884
    %v1638 = vunpack.c.h.b16 %v884
    %v1639 = vunpack.c.l.b16 %v885
    %v1640 = vunpack.c.h.b16 %v885
    %v1641 = vunpack.c.l.b16 %v886
    %v1642 = vunpack.c.h.b16 %v886
    %v1643 = vunpack.c.l.b16 %v887
    %v1644 = vunpack.c.h.b16 %v887
    %v1645 = vunpack.c.l.b16 %v888
    %v1646 = vunpack.c.h.b16 %v888
    %v1647 = vunpack.c.l.b16 %v889
    %v1648 = vunpack.c.h.b16 %v889
    %v1649 = vunpack.c.l.b16 %v890
    %v1650 = vunpack.c.h.b16 %v890
    %v1651 = vunpack.c.l.b16 %v891
    %v1652 = vunpack.c.h.b16 %v891
    %v1653 = vunpack.c.l.b16 %v892
    %v1654 = vunpack.c.h.b16 %v892
    %v1655 = vunpack.c.l.b16 %v893
    %v1656 = vunpack.c.h.b16 %v893
    %v1657 = vunpack.c.l.b16 %v894
    %v1658 = vunpack.c.h.b16 %v894
    %v1659 = vunpack.c.l.b16 %v895
    %v1660 = vunpack.c.h.b16 %v895
    %v1661 = vunpack.c.l.b16 %v896
    %v1662 = vunpack.c.h.b16 %v896
    %v1663 = vunpack.c.l.b16 %v897
    %v1664 = vunpack.c.h.b16 %v897
    %v1665 = vunpack.c.l.b16 %v898
    %v1666 = vunpack.c.h.b16 %v898
    %v1667 = vunpack.c.l.b16 %v899
    %v1668 = vunpack.c.h.b16 %v899
    %v1669 = vunpack.c.l.b16 %v900
    %v1670 = vunpack.c.h.b16 %v900
    %v1671 = vunpack.c.l.b16 %v901
    %v1672 = vunpack.c.h.b16 %v901
    %v1673 = vunpack.c.l.b16 %v902
    %v1674 = vunpack.c.h.b16 %v902
    %v1675 = vunpack.c.l.b16 %v903
    %v1676 = vunpack.c.h.b16 %v903
    %v1677 = vunpack.c.l.b16 %v904
    %v1678 = vunpack.c.h.b16 %v904
    %v1679 = vunpack.c.l.b16 %v905
    %v1680 = vunpack.c.h.b16 %v905
    %v1681 = vunpack.c.l.b16 %v906
    %v1682 = vunpack.c.h.b16 %v906
    %v1683 = vunpack.c.l.b16 %v907
    %v1684 = vunpack.c.h.b16 %v907
    %v1685 = vunpack.c.l.b16 %v908
    %v1686 = vunpack.c.h.b16 %v908
    %v1687 = vunpack.c.l.b16 %v909
    %v1688 = vunpack.c.h.b16 %v909
    %v1689 = vpack.c.b16 %v1181, %v1177
    %v1690 = vpack.c.b16 %v1182, %v1178
    %v1691 = vpack.c.b16 %v1183, %v1179
    %v1692 = vpack.c.b16 %v1184, %v1180
    %v1693 = vpack.c.b16 %v1189, %v1185
    %v1694 = vpack.c.b16 %v1190, %v1186
    %v1695 = vpack.c.b16 %v1191, %v1187
    %v1696 = vpack.c.b16 %v1192, %v1188
    %v1697 = vpack.c.b16 %v1197, %v1193
    %v1698 = vpack.c.b16 %v1198, %v1194
    %v1699 = vpack.c.b16 %v1199, %v1195
    %v1700 = vpack.c.b16 %v1200, %v1196
    %v1701 = vpack.c.b16 %v1205, %v1201
    %v1702 = vpack.c.b16 %v1206, %v1202
    %v1703 = vpack.c.b16 %v1207, %v1203
    %v1704 = vpack.c.b16 %v1208, %v1204
    %v1705 = vpack.c.b16 %v1213, %v1209
    %v1706 = vpack.c.b16 %v1214, %v1210
    %v1707 = vpack.c.b16 %v1215, %v1211
    %v1708 = vpack.c.b16 %v1216, %v1212
    %v1709 = vpack.c.b16 %v1221, %v1217
    %v1710 = vpack.c.b16 %v1222, %v1218
    %v1711 = vpack.c.b16 %v1223, %v1219
    %v1712 = vpack.c.b16 %v1224, %v1220
    %v1713 = vpack.c.b16 %v1229, %v1225
    %v1714 = vpack.c.b16 %v1230, %v1226
    %v1715 = vpack.c.b16 %v1231, %v1227
    %v1716 = vpack.c.b16 %v1232, %v1228
    %v1717 = vpack.c.b16 %v1237, %v1233
    %v1718 = vpack.c.b16 %v1238, %v1234
    %v1719 = vpack.c.b16 %v1239, %v1235
    %v1720 = vpack.c.b16 %v1240, %v1236
    %v1721 = vpack.c.b16 %v1245, %v1241
    %v1722 = vpack.c.b16 %v1246, %v1242
    %v1723 = vpack.c.b16 %v1247, %v1243
    %v1724 = vpack.c.b16 %v1248, %v1244
    %v1725 = vpack.c.b16 %v1253, %v1249
    %v1726 = vpack.c.b16 %v1254, %v1250
    %v1727 = vpack.c.b16 %v1255, %v1251
    %v1728 = vpack.c.b16 %v1256, %v1252
    %v1729 = vpack.c.b16 %v1261, %v1257
    %v1730 = vpack.c.b16 %v1262, %v1258
    %v1731 = vpack.c.b16 %v1263, %v1259
    %v1732 = vpack.c.b16 %v1264, %v1260
    %v1733 = vpack.c.b16 %v1269, %v1265
    %v1734 = vpack.c.b16 %v1270, %v1266
    %v1735 = vpack.c.b16 %v1271, %v1267
    %v1736 = vpack.c.b16 %v1272, %v1268
    %v1737 = vpack.c.b16 %v1277, %v1273
    %v1738 = vpack.c.b16 %v1278, %v1274
    %v1739 = vpack.c.b16 %v1279, %v1275
    %v1740 = vpack.c.b16 %v1280, %v1276
    %v1741 = vpack.c.b16 %v1285, %v1281
    %v1742 = vpack.c.b16 %v1286, %v1282
    %v1743 = vpack.c.b16 %v1287, %v1283
    %v1744 = vpack.c.b16 %v1288, %v1284
    %v1745 = vpack.c.b16 %v1293, %v1289
    %v1746 = vpack.c.b16 %v1294, %v1290
    %v1747 = vpack.c.b16 %v1295, %v1291
    %v1748 = vpack.c.b16 %v1296, %v1292
    %v1749 = vpack.c.b16 %v1301, %v1297
    %v1750 = vpack.c.b16 %v1302, %v1298
    %v1751 = vpack.c.b16 %v1303, %v1299
    %v1752 = vpack.c.b16 %v1304, %v1300
    %v1753 = vpack.c.b16 %v1309, %v1305
    %v1754 = vpack.c.b16 %v1310, %v1306
    %v1755 = vpack.c.b16 %v1311, %v1307
    %v1756 = vpack.c.b16 %v1312, %v1308
    %v1757 = vpack.c.b16 %v1317, %v1313
    %v1758 = vpack.c.b16 %v1318, %v1314
    %v1759 = vpack.c.b16 %v1319, %v1315
    %v1760 = vpack.c.b16 %v1320, %v1316
    %v1761 = vpack.c.b16 %v1325, %v1321
    %v1762 = vpack.c.b16 %v1326, %v1322
    %v1763 = vpack.c.b16 %v1327, %v1323
    %v1764 = vpack.c.b16 %v1328, %v1324
    %v1765 = vpack.c.b16 %v1333, %v1329
    %v1766 = vpack.c.b16 %v1334, %v1330
    %v1767 = vpack.c.b16 %v1335, %v1331
    %v1768 = vpack.c.b16 %v1336, %v1332
    %v1769 = vpack.c.b16 %v1341, %v1337
    %v1770 = vpack.c.b16 %v1342, %v1338
    %v1771 = vpack.c.b16 %v1343, %v1339
    %v1772 = vpack.c.b16 %v1344, %v1340
    %v1773 = vpack.c.b16 %v1349, %v1345
    %v1774 = vpack.c.b16 %v1350, %v1346
    %v1775 = vpack.c.b16 %v1351, %v1347
    %v1776 = vpack.c.b16 %v1352, %v1348
    %v1777 = vpack.c.b16 %v1357, %v1353
    %v1778 = vpack.c.b16 %v1358, %v1354
    %v1779 = vpack.c.b16 %v1359, %v1355
    %v1780 = vpack.c.b16 %v1360, %v1356
    %v1781 = vpack.c.b16 %v1365, %v1361
    %v1782 = vpack.c.b16 %v1366, %v1362
    %v1783 = vpack.c.b16 %v1367, %v1363
    %v1784 = vpack.c.b16 %v1368, %v1364
    %v1785 = vpack.c.b16 %v1373, %v1369
    %v1786 = vpack.c.b16 %v1374, %v1370
    %v1787 = vpack.c.b16 %v1375, %v1371
    %v1788 = vpack.c.b16 %v1376, %v1372
    %v1789 = vpack.c.b16 %v1381, %v1377
    %v1790 = vpack.c.b16 %v1382, %v1378
    %v1791 = vpack.c.b16 %v1383, %v1379
    %v1792 = vpack.c.b16 %v1384, %v1380
    %v1793 = vpack.c.b16 %v1389, %v1385
    %v1794 = vpack.c.b16 %v1390, %v1386
    %v1795 = vpack.c.b16 %v1391, %v1387
    %v1796 = vpack.c.b16 %v1392, %v1388
    %v1797 = vpack.c.b16 %v1397, %v1393
    %v1798 = vpack.c.b16 %v1398, %v1394
    %v1799 = vpack.c.b16 %v1399, %v1395
    %v1800 = vpack.c.b16 %v1400, %v1396
    %v1801 = vpack.c.b16 %v1405, %v1401
    %v1802 = vpack.c.b16 %v1406, %v1402
    %v1803 = vpack.c.b16 %v1407, %v1403
    %v1804 = vpack.c.b16 %v1408, %v1404
    %v1805 = vpack.c.b16 %v1413, %v1409
    %v1806 = vpack.c.b16 %v1414, %v1410
    %v1807 = vpack.c.b16 %v1415, %v1411
    %v1808 = vpack.c.b16 %v1416, %v1412
    %v1809 = vpack.c.b16 %v1421, %v1417
    %v1810 = vpack.c.b16 %v1422, %v1418
    %v1811 = vpack.c.b16 %v1423, %v1419
    %v1812 = vpack.c.b16 %v1424, %v1420
    %v1813 = vpack.c.b16 %v1429, %v1425
    %v1814 = vpack.c.b16 %v1430, %v1426
    %v1815 = vpack.c.b16 %v1431, %v1427
    %v1816 = vpack.c.b16 %v1432, %v1428
    %v1817 = vpack.c.b16 %v1437, %v1433
    %v1818 = vpack.c.b16 %v1438, %v1434
    %v1819 = vpack.c.b16 %v1439, %v1435
    %v1820 = vpack.c.b16 %v1440, %v1436
    %v1821 = vpack.c.b16 %v1445, %v1441
    %v1822 = vpack.c.b16 %v1446, %v1442
    %v1823 = vpack.c.b16 %v1447, %v1443
    %v1824 = vpack.c.b16 %v1448, %v1444
    %v1825 = vpack.c.b16 %v1453, %v1449
    %v1826 = vpack.c.b16 %v1454, %v1450
    %v1827 = vpack.c.b16 %v1455, %v1451
    %v1828 = vpack.c.b16 %v1456, %v1452
    %v1829 = vpack.c.b16 %v1461, %v1457
    %v1830 = vpack.c.b16 %v1462, %v1458
    %v1831 = vpack.c.b16 %v1463, %v1459
    %v1832 = vpack.c.b16 %v1464, %v1460
    %v1833 = vpack.c.b16 %v1469, %v1465
    %v1834 = vpack.c.b16 %v1470, %v1466
    %v1835 = vpack.c.b16 %v1471, %v1467
    %v1836 = vpack.c.b16 %v1472, %v1468
    %v1837 = vpack.c.b16 %v1477, %v1473
    %v1838 = vpack.c.b16 %v1478, %v1474
    %v1839 = vpack.c.b16 %v1479, %v1475
    %v1840 = vpack.c.b16 %v1480, %v1476
    %v1841 = vpack.c.b16 %v1485, %v1481
    %v1842 = vpack.c.b16 %v1486, %v1482
    %v1843 = vpack.c.b16 %v1487, %v1483
    %v1844 = vpack.c.b16 %v1488, %v1484
    %v1845 = vpack.c.b16 %v1493, %v1489
    %v1846 = vpack.c.b16 %v1494, %v1490
    %v1847 = vpack.c.b16 %v1495, %v1491
    %v1848 = vpack.c.b16 %v1496, %v1492
    %v1849 = vpack.c.b16 %v1501, %v1497
    %v1850 = vpack.c.b16 %v1502, %v1498
    %v1851 = vpack.c.b16 %v1503, %v1499
    %v1852 = vpack.c.b16 %v1504, %v1500
    %v1853 = vpack.c.b16 %v1509, %v1505
    %v1854 = vpack.c.b16 %v1510, %v1506
    %v1855 = vpack.c.b16 %v1511, %v1507
    %v1856 = vpack.c.b16 %v1512, %v1508
    %v1857 = vpack.c.b16 %v1517, %v1513
    %v1858 = vpack.c.b16 %v1518, %v1514
    %v1859 = vpack.c.b16 %v1519, %v1515
    %v1860 = vpack.c.b16 %v1520, %v1516
    %v1861 = vpack.c.b16 %v1525, %v1521
    %v1862 = vpack.c.b16 %v1526, %v1522
    %v1863 = vpack.c.b16 %v1527, %v1523
    %v1864 = vpack.c.b16 %v1528, %v1524
    %v1865 = vpack.c.b16 %v1533, %v1529
    %v1866 = vpack.c.b16 %v1534, %v1530
    %v1867 = vpack.c.b16 %v1535, %v1531
    %v1868 = vpack.c.b16 %v1536, %v1532
    %v1869 = vpack.c.b16 %v1541, %v1537
    %v1870 = vpack.c.b16 %v1542, %v1538
    %v1871 = vpack.c.b16 %v1543, %v1539
    %v1872 = vpack.c.b16 %v1544, %v1540
    %v1873 = vpack.c.b16 %v1549, %v1545
    %v1874 = vpack.c.b16 %v1550, %v1546
    %v1875 = vpack.c.b16 %v1551, %v1547
    %v1876 = vpack.c.b16 %v1552, %v1548
    %v1877 = vpack.c.b16 %v1557, %v1553
    %v1878 = vpack.c.b16 %v1558, %v1554
    %v1879 = vpack.c.b16 %v1559, %v1555
    %v1880 = vpack.c.b16 %v1560, %v1556
    %v1881 = vpack.c.b16 %v1565, %v1561
    %v1882 = vpack.c.b16 %v1566, %v1562
    %v1883 = vpack.c.b16 %v1567, %v1563
    %v1884 = vpack.c.b16 %v1568, %v1564
    %v1885 = vpack.c.b16 %v1573, %v1569
    %v1886 = vpack.c.b16 %v1574, %v1570
    %v1887 = vpack.c.b16 %v1575, %v1571
    %v1888 = vpack.c.b16 %v1576, %v1572
    %v1889 = vpack.c.b16 %v1581, %v1577
    %v1890 = vpack.c.b16 %v1582, %v1578
    %v1891 = vpack.c.b16 %v1583, %v1579
    %v1892 = vpack.c.b16 %v1584, %v1580
    %v1893 = vpack.c.b16 %v1589, %v1585
    %v1894 = vpack.c.b16 %v1590, %v1586
    %v1895 = vpack.c.b16 %v1591, %v1587
    %v1896 = vpack.c.b16 %v1592, %v1588
    %v1897 = vpack.c.b16 %v1597, %v1593
    %v1898 = vpack.c.b16 %v1598, %v1594
    %v1899 = vpack.c.b16 %v1599, %v1595
    %v1900 = vpack.c.b16 %v1600, %v1596
    %v1901 = vpack.c.b16 %v1605, %v1601
    %v1902 = vpack.c.b16 %v1606, %v1602
    %v1903 = vpack.c.b16 %v1607, %v1603
    %v1904 = vpack.c.b16 %v1608, %v1604
    %v1905 = vpack.c.b16 %v1613, %v1609
    %v1906 = vpack.c.b16 %v1614, %v1610
    %v1907 = vpack.c.b16 %v1615, %v1611
    %v1908 = vpack.c.b16 %v1616, %v1612
    %v1909 = vpack.c.b16 %v1621, %v1617
    %v1910 = vpack.c.b16 %v1622, %v1618
    %v1911 = vpack.c.b16 %v1623, %v1619
    %v1912 = vpack.c.b16 %v1624, %v1620
    %v1913 = vpack.c.b16 %v1629, %v1625
    %v1914 = vpack.c.b16 %v1630, %v1626
    %v1915 = vpack.c.b16 %v1631, %v1627
    %v1916 = vpack.c.b16 %v1632, %v1628
    %v1917 = vpack.c.b16 %v1637, %v1633
    %v1918 = vpack.c.b16 %v1638, %v1634
    %v1919 = vpack.c.b16 %v1639, %v1635
    %v1920 = vpack.c.b16 %v1640, %v1636
    %v1921 = vpack.c.b16 %v1645, %v1641
    %v1922 = vpack.c.b16 %v1646, %v1642
    %v1923 = vpack.c.b16 %v1647, %v1643
    %v1924 = vpack.c.b16 %v1648, %v1644
    %v1925 = vpack.c.b16 %v1653, %v1649
    %v1926 = vpack.c.b16 %v1654, %v1650
    %v1927 = vpack.c.b16 %v1655, %v1651
    %v1928 = vpack.c.b16 %v1656, %v1652
    %v1929 = vpack.c.b16 %v1661, %v1657
    %v1930 = vpack.c.b16 %v1662, %v1658
    %v1931 = vpack.c.b16 %v1663, %v1659
    %v1932 = vpack.c.b16 %v1664, %v1660
    %v1933 = vpack.c.b16 %v1669, %v1665
    %v1934 = vpack.c.b16 %v1670, %v1666
    %v1935 = vpack.c.b16 %v1671, %v1667
    %v1936 = vpack.c.b16 %v1672, %v1668
    %v1937 = vpack.c.b16 %v1677, %v1673
    %v1938 = vpack.c.b16 %v1678, %v1674
    %v1939 = vpack.c.b16 %v1679, %v1675
    %v1940 = vpack.c.b16 %v1680, %v1676
    %v1941 = vpack.c.b16 %v1685, %v1681
    %v1942 = vpack.c.b16 %v1686, %v1682
    %v1943 = vpack.c.b16 %v1687, %v1683
    %v1944 = vpack.c.b16 %v1688, %v1684
    %2201 = vmatpush.bf16.msra.mxu0 %v1717
    %2202 = vmatpush.bf16.msra.mxu0 %v1713
    %2203 = vmatpush.bf16.msra.mxu0 %v1709
    %2204 = vmatpush.bf16.msra.mxu0 %v1705
    %2205 = vmatpush.bf16.msra.mxu0 %v1701
    %2206 = vmatpush.bf16.msra.mxu0 %v1697
    %2207 = vmatpush.bf16.msra.mxu0 %v1693
    %2208 = vmatpush.bf16.msra.mxu0 %v1689
    %2209 = vmatmul.bf16.gmra.mxu0 %v646
    %v2210 = vpop.f32.mrf.mxu0
    %v2211 = vadd.f32 %v913, %v2210
    %v2212 = vpop.f32.mrf.mxu0
    %2213 = vdwg.mxu0
    %2214 = vmatpush.bf16.msra.mxu0 %v1749
    %2215 = vmatpush.bf16.msra.mxu0 %v1745
    %2216 = vmatpush.bf16.msra.mxu0 %v1741
    %2217 = vmatpush.bf16.msra.mxu0 %v1737
    %2218 = vmatpush.bf16.msra.mxu0 %v1733
    %2219 = vmatpush.bf16.msra.mxu0 %v1729
    %2220 = vmatpush.bf16.msra.mxu0 %v1725
    %2221 = vmatpush.bf16.msra.mxu0 %v1721
    %2222 = vmatmul.bf16.gmra.mxu0 %v647
    %v2223 = vpop.f32.mrf.mxu0
    %v2224 = vadd.f32 %v2211, %v2223
    %v2225 = vpop.f32.mrf.mxu0
    %2226 = vdwg.mxu0
    %2227 = vmatpush.bf16.msra.mxu0 %v1781
    %2228 = vmatpush.bf16.msra.mxu0 %v1777
    %2229 = vmatpush.bf16.msra.mxu0 %v1773
    %2230 = vmatpush.bf16.msra.mxu0 %v1769
    %2231 = vmatpush.bf16.msra.mxu0 %v1765
    %2232 = vmatpush.bf16.msra.mxu0 %v1761
    %2233 = vmatpush.bf16.msra.mxu0 %v1757
    %2234 = vmatpush.bf16.msra.mxu0 %v1753
    %2235 = vmatmul.bf16.gmra.mxu0 %v648
    %v2236 = vpop.f32.mrf.mxu0
    %v2237 = vadd.f32 %v2224, %v2236
    %v2238 = vpop.f32.mrf.mxu0
    %2239 = vdwg.mxu0
    %2240 = vmatpush.bf16.msra.mxu0 %v1813
    %2241 = vmatpush.bf16.msra.mxu0 %v1809
    %2242 = vmatpush.bf16.msra.mxu0 %v1805
    %2243 = vmatpush.bf16.msra.mxu0 %v1801
    %2244 = vmatpush.bf16.msra.mxu0 %v1797
    %2245 = vmatpush.bf16.msra.mxu0 %v1793
    %2246 = vmatpush.bf16.msra.mxu0 %v1789
    %2247 = vmatpush.bf16.msra.mxu0 %v1785
    %2248 = vmatmul.bf16.gmra.mxu0 %v649
    %v2249 = vpop.f32.mrf.mxu0
    %v2250 = vadd.f32 %v2237, %v2249
    %v2251 = vpop.f32.mrf.mxu0
    %2252 = vdwg.mxu0
    %2253 = vmatpush.bf16.msra.mxu0 %v1845
    %2254 = vmatpush.bf16.msra.mxu0 %v1841
    %2255 = vmatpush.bf16.msra.mxu0 %v1837
    %2256 = vmatpush.bf16.msra.mxu0 %v1833
    %2257 = vmatpush.bf16.msra.mxu0 %v1829
    %2258 = vmatpush.bf16.msra.mxu0 %v1825
    %2259 = vmatpush.bf16.msra.mxu0 %v1821
    %2260 = vmatpush.bf16.msra.mxu0 %v1817
    %2261 = vmatmul.bf16.gmra.mxu0 %v650
    %v2262 = vpop.f32.mrf.mxu0
    %v2263 = vadd.f32 %v2250, %v2262
    %v2264 = vpop.f32.mrf.mxu0
    %2265 = vdwg.mxu0
    %2266 = vmatpush.bf16.msra.mxu0 %v1877
    %2267 = vmatpush.bf16.msra.mxu0 %v1873
    %2268 = vmatpush.bf16.msra.mxu0 %v1869
    %2269 = vmatpush.bf16.msra.mxu0 %v1865
    %2270 = vmatpush.bf16.msra.mxu0 %v1861
    %2271 = vmatpush.bf16.msra.mxu0 %v1857
    %2272 = vmatpush.bf16.msra.mxu0 %v1853
    %2273 = vmatpush.bf16.msra.mxu0 %v1849
    %2274 = vmatmul.bf16.gmra.mxu0 %v651
    %v2275 = vpop.f32.mrf.mxu0
    %v2276 = vadd.f32 %v2263, %v2275
    %v2277 = vpop.f32.mrf.mxu0
    %2278 = vdwg.mxu0
    %2279 = vmatpush.bf16.msra.mxu0 %v1909
    %2280 = vmatpush.bf16.msra.mxu0 %v1905
    %2281 = vmatpush.bf16.msra.mxu0 %v1901
    %2282 = vmatpush.bf16.msra.mxu0 %v1897
    %2283 = vmatpush.bf16.msra.mxu0 %v1893
    %2284 = vmatpush.bf16.msra.mxu0 %v1889
    %2285 = vmatpush.bf16.msra.mxu0 %v1885
    %2286 = vmatpush.bf16.msra.mxu0 %v1881
    %2287 = vmatmul.bf16.gmra.mxu0 %v652
    %v2288 = vpop.f32.mrf.mxu0
    %v2289 = vadd.f32 %v2276, %v2288
    %v2290 = vpop.f32.mrf.mxu0
    %2291 = vdwg.mxu0
    %2292 = vmatpush.bf16.msra.mxu0 %v1941
    %2293 = vmatpush.bf16.msra.mxu0 %v1937
    %2294 = vmatpush.bf16.msra.mxu0 %v1933
    %2295 = vmatpush.bf16.msra.mxu0 %v1929
    %2296 = vmatpush.bf16.msra.mxu0 %v1925
    %2297 = vmatpush.bf16.msra.mxu0 %v1921
    %2298 = vmatpush.bf16.msra.mxu0 %v1917
    %2299 = vmatpush.bf16.msra.mxu0 %v1913
    %2300 = vmatmul.bf16.gmra.mxu0 %v653
    %v2301 = vpop.f32.mrf.mxu0
    %v2302 = vadd.f32 %v2289, %v2301
    %v2303 = vpop.f32.mrf.mxu0
    %2304 = vdwg.mxu0
    %2305 = vmatpush.bf16.msra.mxu0 %v1718
    %2306 = vmatpush.bf16.msra.mxu0 %v1714
    %2307 = vmatpush.bf16.msra.mxu0 %v1710
    %2308 = vmatpush.bf16.msra.mxu0 %v1706
    %2309 = vmatpush.bf16.msra.mxu0 %v1702
    %2310 = vmatpush.bf16.msra.mxu0 %v1698
    %2311 = vmatpush.bf16.msra.mxu0 %v1694
    %2312 = vmatpush.bf16.msra.mxu0 %v1690
    %2313 = vmatmul.bf16.gmra.mxu0 %v646
    %v2314 = vpop.f32.mrf.mxu0
    %v2315 = vadd.f32 %v914, %v2314
    %v2316 = vpop.f32.mrf.mxu0
    %2317 = vdwg.mxu0
    %2318 = vmatpush.bf16.msra.mxu0 %v1750
    %2319 = vmatpush.bf16.msra.mxu0 %v1746
    %2320 = vmatpush.bf16.msra.mxu0 %v1742
    %2321 = vmatpush.bf16.msra.mxu0 %v1738
    %2322 = vmatpush.bf16.msra.mxu0 %v1734
    %2323 = vmatpush.bf16.msra.mxu0 %v1730
    %2324 = vmatpush.bf16.msra.mxu0 %v1726
    %2325 = vmatpush.bf16.msra.mxu0 %v1722
    %2326 = vmatmul.bf16.gmra.mxu0 %v647
    %v2327 = vpop.f32.mrf.mxu0
    %v2328 = vadd.f32 %v2315, %v2327
    %v2329 = vpop.f32.mrf.mxu0
    %2330 = vdwg.mxu0
    %2331 = vmatpush.bf16.msra.mxu0 %v1782
    %2332 = vmatpush.bf16.msra.mxu0 %v1778
    %2333 = vmatpush.bf16.msra.mxu0 %v1774
    %2334 = vmatpush.bf16.msra.mxu0 %v1770
    %2335 = vmatpush.bf16.msra.mxu0 %v1766
    %2336 = vmatpush.bf16.msra.mxu0 %v1762
    %2337 = vmatpush.bf16.msra.mxu0 %v1758
    %2338 = vmatpush.bf16.msra.mxu0 %v1754
    %2339 = vmatmul.bf16.gmra.mxu0 %v648
    %v2340 = vpop.f32.mrf.mxu0
    %v2341 = vadd.f32 %v2328, %v2340
    %v2342 = vpop.f32.mrf.mxu0
    %2343 = vdwg.mxu0
    %2344 = vmatpush.bf16.msra.mxu0 %v1814
    %2345 = vmatpush.bf16.msra.mxu0 %v1810
    %2346 = vmatpush.bf16.msra.mxu0 %v1806
    %2347 = vmatpush.bf16.msra.mxu0 %v1802
    %2348 = vmatpush.bf16.msra.mxu0 %v1798
    %2349 = vmatpush.bf16.msra.mxu0 %v1794
    %2350 = vmatpush.bf16.msra.mxu0 %v1790
    %2351 = vmatpush.bf16.msra.mxu0 %v1786
    %2352 = vmatmul.bf16.gmra.mxu0 %v649
    %v2353 = vpop.f32.mrf.mxu0
    %v2354 = vadd.f32 %v2341, %v2353
    %v2355 = vpop.f32.mrf.mxu0
    %2356 = vdwg.mxu0
    %2357 = vmatpush.bf16.msra.mxu0 %v1846
    %2358 = vmatpush.bf16.msra.mxu0 %v1842
    %2359 = vmatpush.bf16.msra.mxu0 %v1838
    %2360 = vmatpush.bf16.msra.mxu0 %v1834
    %2361 = vmatpush.bf16.msra.mxu0 %v1830
    %2362 = vmatpush.bf16.msra.mxu0 %v1826
    %2363 = vmatpush.bf16.msra.mxu0 %v1822
    %2364 = vmatpush.bf16.msra.mxu0 %v1818
    %2365 = vmatmul.bf16.gmra.mxu0 %v650
    %v2366 = vpop.f32.mrf.mxu0
    %v2367 = vadd.f32 %v2354, %v2366
    %v2368 = vpop.f32.mrf.mxu0
    %2369 = vdwg.mxu0
    %2370 = vmatpush.bf16.msra.mxu0 %v1878
    %2371 = vmatpush.bf16.msra.mxu0 %v1874
    %2372 = vmatpush.bf16.msra.mxu0 %v1870
    %2373 = vmatpush.bf16.msra.mxu0 %v1866
    %2374 = vmatpush.bf16.msra.mxu0 %v1862
    %2375 = vmatpush.bf16.msra.mxu0 %v1858
    %2376 = vmatpush.bf16.msra.mxu0 %v1854
    %2377 = vmatpush.bf16.msra.mxu0 %v1850
    %2378 = vmatmul.bf16.gmra.mxu0 %v651
    %v2379 = vpop.f32.mrf.mxu0
    %v2380 = vadd.f32 %v2367, %v2379
    %v2381 = vpop.f32.mrf.mxu0
    %2382 = vdwg.mxu0
    %2383 = vmatpush.bf16.msra.mxu0 %v1910
    %2384 = vmatpush.bf16.msra.mxu0 %v1906
    %2385 = vmatpush.bf16.msra.mxu0 %v1902
    %2386 = vmatpush.bf16.msra.mxu0 %v1898
    %2387 = vmatpush.bf16.msra.mxu0 %v1894
    %2388 = vmatpush.bf16.msra.mxu0 %v1890
    %2389 = vmatpush.bf16.msra.mxu0 %v1886
    %2390 = vmatpush.bf16.msra.mxu0 %v1882
    %2391 = vmatmul.bf16.gmra.mxu0 %v652
    %v2392 = vpop.f32.mrf.mxu0
    %v2393 = vadd.f32 %v2380, %v2392
    %v2394 = vpop.f32.mrf.mxu0
    %2395 = vdwg.mxu0
    %2396 = vmatpush.bf16.msra.mxu0 %v1942
    %2397 = vmatpush.bf16.msra.mxu0 %v1938
    %2398 = vmatpush.bf16.msra.mxu0 %v1934
    %2399 = vmatpush.bf16.msra.mxu0 %v1930
    %2400 = vmatpush.bf16.msra.mxu0 %v1926
    %2401 = vmatpush.bf16.msra.mxu0 %v1922
    %2402 = vmatpush.bf16.msra.mxu0 %v1918
    %2403 = vmatpush.bf16.msra.mxu0 %v1914
    %2404 = vmatmul.bf16.gmra.mxu0 %v653
    %v2405 = vpop.f32.mrf.mxu0
    %v2406 = vadd.f32 %v2393, %v2405
    %v2407 = vpop.f32.mrf.mxu0
    %2408 = vdwg.mxu0
    %2409 = vmatpush.bf16.msra.mxu0 %v1719
    %2410 = vmatpush.bf16.msra.mxu0 %v1715
    %2411 = vmatpush.bf16.msra.mxu0 %v1711
    %2412 = vmatpush.bf16.msra.mxu0 %v1707
    %2413 = vmatpush.bf16.msra.mxu0 %v1703
    %2414 = vmatpush.bf16.msra.mxu0 %v1699
    %2415 = vmatpush.bf16.msra.mxu0 %v1695
    %2416 = vmatpush.bf16.msra.mxu0 %v1691
    %2417 = vmatmul.bf16.gmra.mxu0 %v646
    %v2418 = vpop.f32.mrf.mxu0
    %v2419 = vadd.f32 %v915, %v2418
    %v2420 = vpop.f32.mrf.mxu0
    %2421 = vdwg.mxu0
    %2422 = vmatpush.bf16.msra.mxu0 %v1751
    %2423 = vmatpush.bf16.msra.mxu0 %v1747
    %2424 = vmatpush.bf16.msra.mxu0 %v1743
    %2425 = vmatpush.bf16.msra.mxu0 %v1739
    %2426 = vmatpush.bf16.msra.mxu0 %v1735
    %2427 = vmatpush.bf16.msra.mxu0 %v1731
    %2428 = vmatpush.bf16.msra.mxu0 %v1727
    %2429 = vmatpush.bf16.msra.mxu0 %v1723
    %2430 = vmatmul.bf16.gmra.mxu0 %v647
    %v2431 = vpop.f32.mrf.mxu0
    %v2432 = vadd.f32 %v2419, %v2431
    %v2433 = vpop.f32.mrf.mxu0
    %2434 = vdwg.mxu0
    %2435 = vmatpush.bf16.msra.mxu0 %v1783
    %2436 = vmatpush.bf16.msra.mxu0 %v1779
    %2437 = vmatpush.bf16.msra.mxu0 %v1775
    %2438 = vmatpush.bf16.msra.mxu0 %v1771
    %2439 = vmatpush.bf16.msra.mxu0 %v1767
    %2440 = vmatpush.bf16.msra.mxu0 %v1763
    %2441 = vmatpush.bf16.msra.mxu0 %v1759
    %2442 = vmatpush.bf16.msra.mxu0 %v1755
    %2443 = vmatmul.bf16.gmra.mxu0 %v648
    %v2444 = vpop.f32.mrf.mxu0
    %v2445 = vadd.f32 %v2432, %v2444
    %v2446 = vpop.f32.mrf.mxu0
    %2447 = vdwg.mxu0
    %2448 = vmatpush.bf16.msra.mxu0 %v1815
    %2449 = vmatpush.bf16.msra.mxu0 %v1811
    %2450 = vmatpush.bf16.msra.mxu0 %v1807
    %2451 = vmatpush.bf16.msra.mxu0 %v1803
    %2452 = vmatpush.bf16.msra.mxu0 %v1799
    %2453 = vmatpush.bf16.msra.mxu0 %v1795
    %2454 = vmatpush.bf16.msra.mxu0 %v1791
    %2455 = vmatpush.bf16.msra.mxu0 %v1787
    %2456 = vmatmul.bf16.gmra.mxu0 %v649
    %v2457 = vpop.f32.mrf.mxu0
    %v2458 = vadd.f32 %v2445, %v2457
    %v2459 = vpop.f32.mrf.mxu0
    %2460 = vdwg.mxu0
    %2461 = vmatpush.bf16.msra.mxu0 %v1847
    %2462 = vmatpush.bf16.msra.mxu0 %v1843
    %2463 = vmatpush.bf16.msra.mxu0 %v1839
    %2464 = vmatpush.bf16.msra.mxu0 %v1835
    %2465 = vmatpush.bf16.msra.mxu0 %v1831
    %2466 = vmatpush.bf16.msra.mxu0 %v1827
    %2467 = vmatpush.bf16.msra.mxu0 %v1823
    %2468 = vmatpush.bf16.msra.mxu0 %v1819
    %2469 = vmatmul.bf16.gmra.mxu0 %v650
    %v2470 = vpop.f32.mrf.mxu0
    %v2471 = vadd.f32 %v2458, %v2470
    %v2472 = vpop.f32.mrf.mxu0
    %2473 = vdwg.mxu0
    %2474 = vmatpush.bf16.msra.mxu0 %v1879
    %2475 = vmatpush.bf16.msra.mxu0 %v1875
    %2476 = vmatpush.bf16.msra.mxu0 %v1871
    %2477 = vmatpush.bf16.msra.mxu0 %v1867
    %2478 = vmatpush.bf16.msra.mxu0 %v1863
    %2479 = vmatpush.bf16.msra.mxu0 %v1859
    %2480 = vmatpush.bf16.msra.mxu0 %v1855
    %2481 = vmatpush.bf16.msra.mxu0 %v1851
    %2482 = vmatmul.bf16.gmra.mxu0 %v651
    %v2483 = vpop.f32.mrf.mxu0
    %v2484 = vadd.f32 %v2471, %v2483
    %v2485 = vpop.f32.mrf.mxu0
    %2486 = vdwg.mxu0
    %2487 = vmatpush.bf16.msra.mxu0 %v1911
    %2488 = vmatpush.bf16.msra.mxu0 %v1907
    %2489 = vmatpush.bf16.msra.mxu0 %v1903
    %2490 = vmatpush.bf16.msra.mxu0 %v1899
    %2491 = vmatpush.bf16.msra.mxu0 %v1895
    %2492 = vmatpush.bf16.msra.mxu0 %v1891
    %2493 = vmatpush.bf16.msra.mxu0 %v1887
    %2494 = vmatpush.bf16.msra.mxu0 %v1883
    %2495 = vmatmul.bf16.gmra.mxu0 %v652
    %v2496 = vpop.f32.mrf.mxu0
    %v2497 = vadd.f32 %v2484, %v2496
    %v2498 = vpop.f32.mrf.mxu0
    %2499 = vdwg.mxu0
    %2500 = vmatpush.bf16.msra.mxu0 %v1943
    %2501 = vmatpush.bf16.msra.mxu0 %v1939
    %2502 = vmatpush.bf16.msra.mxu0 %v1935
    %2503 = vmatpush.bf16.msra.mxu0 %v1931
    %2504 = vmatpush.bf16.msra.mxu0 %v1927
    %2505 = vmatpush.bf16.msra.mxu0 %v1923
    %2506 = vmatpush.bf16.msra.mxu0 %v1919
    %2507 = vmatpush.bf16.msra.mxu0 %v1915
    %2508 = vmatmul.bf16.gmra.mxu0 %v653
    %v2509 = vpop.f32.mrf.mxu0
    %v2510 = vadd.f32 %v2497, %v2509
    %v2511 = vpop.f32.mrf.mxu0
    %2512 = vdwg.mxu0
    %2513 = vmatpush.bf16.msra.mxu0 %v1720
    %2514 = vmatpush.bf16.msra.mxu0 %v1716
    %2515 = vmatpush.bf16.msra.mxu0 %v1712
    %2516 = vmatpush.bf16.msra.mxu0 %v1708
    %2517 = vmatpush.bf16.msra.mxu0 %v1704
    %2518 = vmatpush.bf16.msra.mxu0 %v1700
    %2519 = vmatpush.bf16.msra.mxu0 %v1696
    %2520 = vmatpush.bf16.msra.mxu0 %v1692
    %2521 = vmatmul.bf16.gmra.mxu0 %v646
    %v2522 = vpop.f32.mrf.mxu0
    %v2523 = vadd.f32 %v916, %v2522
    %v2524 = vpop.f32.mrf.mxu0
    %2525 = vdwg.mxu0
    %2526 = vmatpush.bf16.msra.mxu0 %v1752
    %2527 = vmatpush.bf16.msra.mxu0 %v1748
    %2528 = vmatpush.bf16.msra.mxu0 %v1744
    %2529 = vmatpush.bf16.msra.mxu0 %v1740
    %2530 = vmatpush.bf16.msra.mxu0 %v1736
    %2531 = vmatpush.bf16.msra.mxu0 %v1732
    %2532 = vmatpush.bf16.msra.mxu0 %v1728
    %2533 = vmatpush.bf16.msra.mxu0 %v1724
    %2534 = vmatmul.bf16.gmra.mxu0 %v647
    %v2535 = vpop.f32.mrf.mxu0
    %v2536 = vadd.f32 %v2523, %v2535
    %v2537 = vpop.f32.mrf.mxu0
    %2538 = vdwg.mxu0
    %2539 = vmatpush.bf16.msra.mxu0 %v1784
    %2540 = vmatpush.bf16.msra.mxu0 %v1780
    %2541 = vmatpush.bf16.msra.mxu0 %v1776
    %2542 = vmatpush.bf16.msra.mxu0 %v1772
    %2543 = vmatpush.bf16.msra.mxu0 %v1768
    %2544 = vmatpush.bf16.msra.mxu0 %v1764
    %2545 = vmatpush.bf16.msra.mxu0 %v1760
    %2546 = vmatpush.bf16.msra.mxu0 %v1756
    %2547 = vmatmul.bf16.gmra.mxu0 %v648
    %v2548 = vpop.f32.mrf.mxu0
    %v2549 = vadd.f32 %v2536, %v2548
    %v2550 = vpop.f32.mrf.mxu0
    %2551 = vdwg.mxu0
    %2552 = vmatpush.bf16.msra.mxu0 %v1816
    %2553 = vmatpush.bf16.msra.mxu0 %v1812
    %2554 = vmatpush.bf16.msra.mxu0 %v1808
    %2555 = vmatpush.bf16.msra.mxu0 %v1804
    %2556 = vmatpush.bf16.msra.mxu0 %v1800
    %2557 = vmatpush.bf16.msra.mxu0 %v1796
    %2558 = vmatpush.bf16.msra.mxu0 %v1792
    %2559 = vmatpush.bf16.msra.mxu0 %v1788
    %2560 = vmatmul.bf16.gmra.mxu0 %v649
    %v2561 = vpop.f32.mrf.mxu0
    %v2562 = vadd.f32 %v2549, %v2561
    %v2563 = vpop.f32.mrf.mxu0
    %2564 = vdwg.mxu0
    %2565 = vmatpush.bf16.msra.mxu0 %v1848
    %2566 = vmatpush.bf16.msra.mxu0 %v1844
    %2567 = vmatpush.bf16.msra.mxu0 %v1840
    %2568 = vmatpush.bf16.msra.mxu0 %v1836
    %2569 = vmatpush.bf16.msra.mxu0 %v1832
    %2570 = vmatpush.bf16.msra.mxu0 %v1828
    %2571 = vmatpush.bf16.msra.mxu0 %v1824
    %2572 = vmatpush.bf16.msra.mxu0 %v1820
    %2573 = vmatmul.bf16.gmra.mxu0 %v650
    %v2574 = vpop.f32.mrf.mxu0
    %v2575 = vadd.f32 %v2562, %v2574
    %v2576 = vpop.f32.mrf.mxu0
    %2577 = vdwg.mxu0
    %2578 = vmatpush.bf16.msra.mxu0 %v1880
    %2579 = vmatpush.bf16.msra.mxu0 %v1876
    %2580 = vmatpush.bf16.msra.mxu0 %v1872
    %2581 = vmatpush.bf16.msra.mxu0 %v1868
    %2582 = vmatpush.bf16.msra.mxu0 %v1864
    %2583 = vmatpush.bf16.msra.mxu0 %v1860
    %2584 = vmatpush.bf16.msra.mxu0 %v1856
    %2585 = vmatpush.bf16.msra.mxu0 %v1852
    %2586 = vmatmul.bf16.gmra.mxu0 %v651
    %v2587 = vpop.f32.mrf.mxu0
    %v2588 = vadd.f32 %v2575, %v2587
    %v2589 = vpop.f32.mrf.mxu0
    %2590 = vdwg.mxu0
    %2591 = vmatpush.bf16.msra.mxu0 %v1912
    %2592 = vmatpush.bf16.msra.mxu0 %v1908
    %2593 = vmatpush.bf16.msra.mxu0 %v1904
    %2594 = vmatpush.bf16.msra.mxu0 %v1900
    %2595 = vmatpush.bf16.msra.mxu0 %v1896
    %2596 = vmatpush.bf16.msra.mxu0 %v1892
    %2597 = vmatpush.bf16.msra.mxu0 %v1888
    %2598 = vmatpush.bf16.msra.mxu0 %v1884
    %2599 = vmatmul.bf16.gmra.mxu0 %v652
    %v2600 = vpop.f32.mrf.mxu0
    %v2601 = vadd.f32 %v2588, %v2600
    %v2602 = vpop.f32.mrf.mxu0
    %2603 = vdwg.mxu0
    %2604 = vmatpush.bf16.msra.mxu0 %v1944
    %2605 = vmatpush.bf16.msra.mxu0 %v1940
    %2606 = vmatpush.bf16.msra.mxu0 %v1936
    %2607 = vmatpush.bf16.msra.mxu0 %v1932
    %2608 = vmatpush.bf16.msra.mxu0 %v1928
    %2609 = vmatpush.bf16.msra.mxu0 %v1924
    %2610 = vmatpush.bf16.msra.mxu0 %v1920
    %2611 = vmatpush.bf16.msra.mxu0 %v1916
    %2612 = vmatmul.bf16.gmra.mxu0 %v653
    %v2613 = vpop.f32.mrf.mxu0
    %v2614 = vadd.f32 %v2601, %v2613
    %v2615 = vpop.f32.mrf.mxu0
    %2616 = vdwg.mxu0
    %vm2617 = vcmp.ge.f32.partialorder %v2302, 0.0
    %vm2618 = vcmp.ge.f32.partialorder %v2406, 0.0
    %vm2619 = vcmp.ge.f32.partialorder %v2510, 0.0
    %vm2620 = vcmp.ge.f32.partialorder %v2614, 0.0
    %v2621 = vmul.f32 %v2302, 0.01
    %v2622 = vmul.f32 %v2406, 0.01
    %v2623 = vmul.f32 %v2510, 0.01
    %v2624 = vmul.f32 %v2614, 0.01
    %v2625 = vsel %vm2617, %v2302, %v2621
    %v2626 = vsel %vm2618, %v2406, %v2622
    %v2627 = vsel %vm2619, %v2510, %v2623
    %v2628 = vsel %vm2620, %v2614, %v2624
    %v2629 = vpack.c.bf16 %v2625, %v2625
    %v2630 = vpack.c.bf16 %v2626, %v2626
    %v2631 = vpack.c.bf16 %v2627, %v2627
    %v2632 = vpack.c.bf16 %v2628, %v2628
    %v2633 = vld [vmem:[%s4] sm:$0xff]
    %v2634 = vld [vmem:[%s4 + $0x8] sm:$0xff]
    %v2635 = vld [vmem:[%s4 + $0x10] sm:$0xff]
    %v2636 = vld [vmem:[%s4 + $0x18] sm:$0xff]
    %v2637 = vld [vmem:[%s4 + $0x20] sm:$0xff]
    %v2638 = vld [vmem:[%s4 + $0x28] sm:$0xff]
    %v2639 = vld [vmem:[%s4 + $0x30] sm:$0xff]
    %v2640 = vld [vmem:[%s4 + $0x38] sm:$0xff]
    %v2641 = vld [vmem:[%s4 + $0x40] sm:$0xff]
    %v2642 = vld [vmem:[%s4 + $0x48] sm:$0xff]
    %v2643 = vld [vmem:[%s4 + $0x50] sm:$0xff]
    %v2644 = vld [vmem:[%s4 + $0x58] sm:$0xff]
    %v2645 = vld [vmem:[%s4 + $0x60] sm:$0xff]
    %v2646 = vld [vmem:[%s4 + $0x68] sm:$0xff]
    %v2647 = vld [vmem:[%s4 + $0x70] sm:$0xff]
    %v2648 = vld [vmem:[%s4 + $0x78] sm:$0xff]
    %v2649 = vld [vmem:[%s4 + $0x80] sm:$0xff]
    %v2650 = vld [vmem:[%s4 + $0x88] sm:$0xff]
    %v2651 = vld [vmem:[%s4 + $0x90] sm:$0xff]
    %v2652 = vld [vmem:[%s4 + $0x98] sm:$0xff]
    %v2653 = vld [vmem:[%s4 + $0xa0] sm:$0xff]
    %v2654 = vld [vmem:[%s4 + $0xa8] sm:$0xff]
    %v2655 = vld [vmem:[%s4 + $0xb0] sm:$0xff]
    %v2656 = vld [vmem:[%s4 + $0xb8] sm:$0xff]
    %v2657 = vld [vmem:[%s4 + $0xc0] sm:$0xff]
    %v2658 = vld [vmem:[%s4 + $0xc8] sm:$0xff]
    %v2659 = vld [vmem:[%s4 + $0xd0] sm:$0xff]
    %v2660 = vld [vmem:[%s4 + $0xd8] sm:$0xff]
    %v2661 = vld [vmem:[%s4 + $0xe0] sm:$0xff]
    %v2662 = vld [vmem:[%s4 + $0xe8] sm:$0xff]
    %v2663 = vld [vmem:[%s4 + $0xf0] sm:$0xff]
    %v2664 = vld [vmem:[%s4 + $0xf8] sm:$0xff]
    %v2665 = vld [vmem:[%s4 + $0x100] sm:$0xff]
    %v2666 = vld [vmem:[%s4 + $0x108] sm:$0xff]
    %v2667 = vld [vmem:[%s4 + $0x110] sm:$0xff]
    %v2668 = vld [vmem:[%s4 + $0x118] sm:$0xff]
    %v2669 = vld [vmem:[%s4 + $0x120] sm:$0xff]
    %v2670 = vld [vmem:[%s4 + $0x128] sm:$0xff]
    %v2671 = vld [vmem:[%s4 + $0x130] sm:$0xff]
    %v2672 = vld [vmem:[%s4 + $0x138] sm:$0xff]
    %v2673 = vld [vmem:[%s4 + $0x140] sm:$0xff]
    %v2674 = vld [vmem:[%s4 + $0x148] sm:$0xff]
    %v2675 = vld [vmem:[%s4 + $0x150] sm:$0xff]
    %v2676 = vld [vmem:[%s4 + $0x158] sm:$0xff]
    %v2677 = vld [vmem:[%s4 + $0x160] sm:$0xff]
    %v2678 = vld [vmem:[%s4 + $0x168] sm:$0xff]
    %v2679 = vld [vmem:[%s4 + $0x170] sm:$0xff]
    %v2680 = vld [vmem:[%s4 + $0x178] sm:$0xff]
    %v2681 = vld [vmem:[%s4 + $0x180] sm:$0xff]
    %v2682 = vld [vmem:[%s4 + $0x188] sm:$0xff]
    %v2683 = vld [vmem:[%s4 + $0x190] sm:$0xff]
    %v2684 = vld [vmem:[%s4 + $0x198] sm:$0xff]
    %v2685 = vld [vmem:[%s4 + $0x1a0] sm:$0xff]
    %v2686 = vld [vmem:[%s4 + $0x1a8] sm:$0xff]
    %v2687 = vld [vmem:[%s4 + $0x1b0] sm:$0xff]
    %v2688 = vld [vmem:[%s4 + $0x1b8] sm:$0xff]
    %v2689 = vld [vmem:[%s4 + $0x1c0] sm:$0xff]
    %v2690 = vld [vmem:[%s4 + $0x1c8] sm:$0xff]
    %v2691 = vld [vmem:[%s4 + $0x1d0] sm:$0xff]
    %v2692 = vld [vmem:[%s4 + $0x1d8] sm:$0xff]
    %v2693 = vld [vmem:[%s4 + $0x1e0] sm:$0xff]
    %v2694 = vld [vmem:[%s4 + $0x1e8] sm:$0xff]
    %v2695 = vld [vmem:[%s4 + $0x1f0] sm:$0xff]
    %v2696 = vld [vmem:[%s4 + $0x1f8] sm:$0xff]
    %s2697 = scalar_lea.vmem %s7, 3
    %v2698 = vld [vmem:[%s2697] ss:$8 sm:$0x3]
    %v2700 = vperm.slane %v2698, 0
    %v2701 = vperm.slane %v2698, 1
    %v2768 = vunpack.c.l.b16 %v2633
    %v2769 = vunpack.c.h.b16 %v2633
    %v2770 = vunpack.c.l.b16 %v2634
    %v2771 = vunpack.c.h.b16 %v2634
    %v2772 = vunpack.c.l.b16 %v2635
    %v2773 = vunpack.c.h.b16 %v2635
    %v2774 = vunpack.c.l.b16 %v2636
    %v2775 = vunpack.c.h.b16 %v2636
    %v2776 = vunpack.c.l.b16 %v2637
    %v2777 = vunpack.c.h.b16 %v2637
    %v2778 = vunpack.c.l.b16 %v2638
    %v2779 = vunpack.c.h.b16 %v2638
    %v2780 = vunpack.c.l.b16 %v2639
    %v2781 = vunpack.c.h.b16 %v2639
    %v2782 = vunpack.c.l.b16 %v2640
    %v2783 = vunpack.c.h.b16 %v2640
    %v2784 = vunpack.c.l.b16 %v2641
    %v2785 = vunpack.c.h.b16 %v2641
    %v2786 = vunpack.c.l.b16 %v2642
    %v2787 = vunpack.c.h.b16 %v2642
    %v2788 = vunpack.c.l.b16 %v2643
    %v2789 = vunpack.c.h.b16 %v2643
    %v2790 = vunpack.c.l.b16 %v2644
    %v2791 = vunpack.c.h.b16 %v2644
    %v2792 = vunpack.c.l.b16 %v2645
    %v2793 = vunpack.c.h.b16 %v2645
    %v2794 = vunpack.c.l.b16 %v2646
    %v2795 = vunpack.c.h.b16 %v2646
    %v2796 = vunpack.c.l.b16 %v2647
    %v2797 = vunpack.c.h.b16 %v2647
    %v2798 = vunpack.c.l.b16 %v2648
    %v2799 = vunpack.c.h.b16 %v2648
    %v2800 = vunpack.c.l.b16 %v2649
    %v2801 = vunpack.c.h.b16 %v2649
    %v2802 = vunpack.c.l.b16 %v2650
    %v2803 = vunpack.c.h.b16 %v2650
    %v2804 = vunpack.c.l.b16 %v2651
    %v2805 = vunpack.c.h.b16 %v2651
    %v2806 = vunpack.c.l.b16 %v2652
    %v2807 = vunpack.c.h.b16 %v2652
    %v2808 = vunpack.c.l.b16 %v2653
    %v2809 = vunpack.c.h.b16 %v2653
    %v2810 = vunpack.c.l.b16 %v2654
    %v2811 = vunpack.c.h.b16 %v2654
    %v2812 = vunpack.c.l.b16 %v2655
    %v2813 = vunpack.c.h.b16 %v2655
    %v2814 = vunpack.c.l.b16 %v2656
    %v2815 = vunpack.c.h.b16 %v2656
    %v2816 = vunpack.c.l.b16 %v2657
    %v2817 = vunpack.c.h.b16 %v2657
    %v2818 = vunpack.c.l.b16 %v2658
    %v2819 = vunpack.c.h.b16 %v2658
    %v2820 = vunpack.c.l.b16 %v2659
    %v2821 = vunpack.c.h.b16 %v2659
    %v2822 = vunpack.c.l.b16 %v2660
    %v2823 = vunpack.c.h.b16 %v2660
    %v2824 = vunpack.c.l.b16 %v2661
    %v2825 = vunpack.c.h.b16 %v2661
    %v2826 = vunpack.c.l.b16 %v2662
    %v2827 = vunpack.c.h.b16 %v2662
    %v2828 = vunpack.c.l.b16 %v2663
    %v2829 = vunpack.c.h.b16 %v2663
    %v2830 = vunpack.c.l.b16 %v2664
    %v2831 = vunpack.c.h.b16 %v2664
    %v2832 = vunpack.c.l.b16 %v2665
    %v2833 = vunpack.c.h.b16 %v2665
    %v2834 = vunpack.c.l.b16 %v2666
    %v2835 = vunpack.c.h.b16 %v2666
    %v2836 = vunpack.c.l.b16 %v2667
    %v2837 = vunpack.c.h.b16 %v2667
    %v2838 = vunpack.c.l.b16 %v2668
    %v2839 = vunpack.c.h.b16 %v2668
    %v2840 = vunpack.c.l.b16 %v2669
    %v2841 = vunpack.c.h.b16 %v2669
    %v2842 = vunpack.c.l.b16 %v2670
    %v2843 = vunpack.c.h.b16 %v2670
    %v2844 = vunpack.c.l.b16 %v2671
    %v2845 = vunpack.c.h.b16 %v2671
    %v2846 = vunpack.c.l.b16 %v2672
    %v2847 = vunpack.c.h.b16 %v2672
    %v2848 = vunpack.c.l.b16 %v2673
    %v2849 = vunpack.c.h.b16 %v2673
    %v2850 = vunpack.c.l.b16 %v2674
    %v2851 = vunpack.c.h.b16 %v2674
    %v2852 = vunpack.c.l.b16 %v2675
    %v2853 = vunpack.c.h.b16 %v2675
    %v2854 = vunpack.c.l.b16 %v2676
    %v2855 = vunpack.c.h.b16 %v2676
    %v2856 = vunpack.c.l.b16 %v2677
    %v2857 = vunpack.c.h.b16 %v2677
    %v2858 = vunpack.c.l.b16 %v2678
    %v2859 = vunpack.c.h.b16 %v2678
    %v2860 = vunpack.c.l.b16 %v2679
    %v2861 = vunpack.c.h.b16 %v2679
    %v2862 = vunpack.c.l.b16 %v2680
    %v2863 = vunpack.c.h.b16 %v2680
    %v2864 = vunpack.c.l.b16 %v2681
    %v2865 = vunpack.c.h.b16 %v2681
    %v2866 = vunpack.c.l.b16 %v2682
    %v2867 = vunpack.c.h.b16 %v2682
    %v2868 = vunpack.c.l.b16 %v2683
    %v2869 = vunpack.c.h.b16 %v2683
    %v2870 = vunpack.c.l.b16 %v2684
    %v2871 = vunpack.c.h.b16 %v2684
    %v2872 = vunpack.c.l.b16 %v2685
    %v2873 = vunpack.c.h.b16 %v2685
    %v2874 = vunpack.c.l.b16 %v2686
    %v2875 = vunpack.c.h.b16 %v2686
    %v2876 = vunpack.c.l.b16 %v2687
    %v2877 = vunpack.c.h.b16 %v2687
    %v2878 = vunpack.c.l.b16 %v2688
    %v2879 = vunpack.c.h.b16 %v2688
    %v2880 = vunpack.c.l.b16 %v2689
    %v2881 = vunpack.c.h.b16 %v2689
    %v2882 = vunpack.c.l.b16 %v2690
    %v2883 = vunpack.c.h.b16 %v2690
    %v2884 = vunpack.c.l.b16 %v2691
    %v2885 = vunpack.c.h.b16 %v2691
    %v2886 = vunpack.c.l.b16 %v2692
    %v2887 = vunpack.c.h.b16 %v2692
    %v2888 = vunpack.c.l.b16 %v2693
    %v2889 = vunpack.c.h.b16 %v2693
    %v2890 = vunpack.c.l.b16 %v2694
    %v2891 = vunpack.c.h.b16 %v2694
    %v2892 = vunpack.c.l.b16 %v2695
    %v2893 = vunpack.c.h.b16 %v2695
    %v2894 = vunpack.c.l.b16 %v2696
    %v2895 = vunpack.c.h.b16 %v2696
    %v2896 = vpack.c.b16 %v2770, %v2768
    %v2897 = vpack.c.b16 %v2771, %v2769
    %v2898 = vpack.c.b16 %v2774, %v2772
    %v2899 = vpack.c.b16 %v2775, %v2773
    %v2900 = vpack.c.b16 %v2778, %v2776
    %v2901 = vpack.c.b16 %v2779, %v2777
    %v2902 = vpack.c.b16 %v2782, %v2780
    %v2903 = vpack.c.b16 %v2783, %v2781
    %v2904 = vpack.c.b16 %v2786, %v2784
    %v2905 = vpack.c.b16 %v2787, %v2785
    %v2906 = vpack.c.b16 %v2790, %v2788
    %v2907 = vpack.c.b16 %v2791, %v2789
    %v2908 = vpack.c.b16 %v2794, %v2792
    %v2909 = vpack.c.b16 %v2795, %v2793
    %v2910 = vpack.c.b16 %v2798, %v2796
    %v2911 = vpack.c.b16 %v2799, %v2797
    %v2912 = vpack.c.b16 %v2802, %v2800
    %v2913 = vpack.c.b16 %v2803, %v2801
    %v2914 = vpack.c.b16 %v2806, %v2804
    %v2915 = vpack.c.b16 %v2807, %v2805
    %v2916 = vpack.c.b16 %v2810, %v2808
    %v2917 = vpack.c.b16 %v2811, %v2809
    %v2918 = vpack.c.b16 %v2814, %v2812
    %v2919 = vpack.c.b16 %v2815, %v2813
    %v2920 = vpack.c.b16 %v2818, %v2816
    %v2921 = vpack.c.b16 %v2819, %v2817
    %v2922 = vpack.c.b16 %v2822, %v2820
    %v2923 = vpack.c.b16 %v2823, %v2821
    %v2924 = vpack.c.b16 %v2826, %v2824
    %v2925 = vpack.c.b16 %v2827, %v2825
    %v2926 = vpack.c.b16 %v2830, %v2828
    %v2927 = vpack.c.b16 %v2831, %v2829
    %v2928 = vpack.c.b16 %v2834, %v2832
    %v2929 = vpack.c.b16 %v2835, %v2833
    %v2930 = vpack.c.b16 %v2838, %v2836
    %v2931 = vpack.c.b16 %v2839, %v2837
    %v2932 = vpack.c.b16 %v2842, %v2840
    %v2933 = vpack.c.b16 %v2843, %v2841
    %v2934 = vpack.c.b16 %v2846, %v2844
    %v2935 = vpack.c.b16 %v2847, %v2845
    %v2936 = vpack.c.b16 %v2850, %v2848
    %v2937 = vpack.c.b16 %v2851, %v2849
    %v2938 = vpack.c.b16 %v2854, %v2852
    %v2939 = vpack.c.b16 %v2855, %v2853
    %v2940 = vpack.c.b16 %v2858, %v2856
    %v2941 = vpack.c.b16 %v2859, %v2857
    %v2942 = vpack.c.b16 %v2862, %v2860
    %v2943 = vpack.c.b16 %v2863, %v2861
    %v2944 = vpack.c.b16 %v2866, %v2864
    %v2945 = vpack.c.b16 %v2867, %v2865
    %v2946 = vpack.c.b16 %v2870, %v2868
    %v2947 = vpack.c.b16 %v2871, %v2869
    %v2948 = vpack.c.b16 %v2874, %v2872
    %v2949 = vpack.c.b16 %v2875, %v2873
    %v2950 = vpack.c.b16 %v2878, %v2876
    %v2951 = vpack.c.b16 %v2879, %v2877
    %v2952 = vpack.c.b16 %v2882, %v2880
    %v2953 = vpack.c.b16 %v2883, %v2881
    %v2954 = vpack.c.b16 %v2886, %v2884
    %v2955 = vpack.c.b16 %v2887, %v2885
    %v2956 = vpack.c.b16 %v2890, %v2888
    %v2957 = vpack.c.b16 %v2891, %v2889
    %v2958 = vpack.c.b16 %v2894, %v2892
    %v2959 = vpack.c.b16 %v2895, %v2893
    %3024 = vmatpush.bf16.msra.mxu0 %v2910
    %3025 = vmatpush.bf16.msra.mxu0 %v2908
    %3026 = vmatpush.bf16.msra.mxu0 %v2906
    %3027 = vmatpush.bf16.msra.mxu0 %v2904
    %3028 = vmatpush.bf16.msra.mxu0 %v2902
    %3029 = vmatpush.bf16.msra.mxu0 %v2900
    %3030 = vmatpush.bf16.msra.mxu0 %v2898
    %3031 = vmatpush.bf16.msra.mxu0 %v2896
    %3032 = vmatmul.bf16.gmra.mxu0 %v2629
    %v3033 = vpop.f32.mrf.mxu0
    %v3034 = vadd.f32 %v2700, %v3033
    %v3035 = vpop.f32.mrf.mxu0
    %3036 = vdwg.mxu0
    %3037 = vmatpush.bf16.msra.mxu0 %v2926
    %3038 = vmatpush.bf16.msra.mxu0 %v2924
    %3039 = vmatpush.bf16.msra.mxu0 %v2922
    %3040 = vmatpush.bf16.msra.mxu0 %v2920
    %3041 = vmatpush.bf16.msra.mxu0 %v2918
    %3042 = vmatpush.bf16.msra.mxu0 %v2916
    %3043 = vmatpush.bf16.msra.mxu0 %v2914
    %3044 = vmatpush.bf16.msra.mxu0 %v2912
    %3045 = vmatmul.bf16.gmra.mxu0 %v2630
    %v3046 = vpop.f32.mrf.mxu0
    %v3047 = vadd.f32 %v3034, %v3046
    %v3048 = vpop.f32.mrf.mxu0
    %3049 = vdwg.mxu0
    %3050 = vmatpush.bf16.msra.mxu0 %v2942
    %3051 = vmatpush.bf16.msra.mxu0 %v2940
    %3052 = vmatpush.bf16.msra.mxu0 %v2938
    %3053 = vmatpush.bf16.msra.mxu0 %v2936
    %3054 = vmatpush.bf16.msra.mxu0 %v2934
    %3055 = vmatpush.bf16.msra.mxu0 %v2932
    %3056 = vmatpush.bf16.msra.mxu0 %v2930
    %3057 = vmatpush.bf16.msra.mxu0 %v2928
    %3058 = vmatmul.bf16.gmra.mxu0 %v2631
    %v3059 = vpop.f32.mrf.mxu0
    %v3060 = vadd.f32 %v3047, %v3059
    %v3061 = vpop.f32.mrf.mxu0
    %3062 = vdwg.mxu0
    %3063 = vmatpush.bf16.msra.mxu0 %v2958
    %3064 = vmatpush.bf16.msra.mxu0 %v2956
    %3065 = vmatpush.bf16.msra.mxu0 %v2954
    %3066 = vmatpush.bf16.msra.mxu0 %v2952
    %3067 = vmatpush.bf16.msra.mxu0 %v2950
    %3068 = vmatpush.bf16.msra.mxu0 %v2948
    %3069 = vmatpush.bf16.msra.mxu0 %v2946
    %3070 = vmatpush.bf16.msra.mxu0 %v2944
    %3071 = vmatmul.bf16.gmra.mxu0 %v2632
    %v3072 = vpop.f32.mrf.mxu0
    %v3073 = vadd.f32 %v3060, %v3072
    %v3074 = vpop.f32.mrf.mxu0
    %3075 = vdwg.mxu0
    %3076 = vmatpush.bf16.msra.mxu0 %v2911
    %3077 = vmatpush.bf16.msra.mxu0 %v2909
    %3078 = vmatpush.bf16.msra.mxu0 %v2907
    %3079 = vmatpush.bf16.msra.mxu0 %v2905
    %3080 = vmatpush.bf16.msra.mxu0 %v2903
    %3081 = vmatpush.bf16.msra.mxu0 %v2901
    %3082 = vmatpush.bf16.msra.mxu0 %v2899
    %3083 = vmatpush.bf16.msra.mxu0 %v2897
    %3084 = vmatmul.bf16.gmra.mxu0 %v2629
    %v3085 = vpop.f32.mrf.mxu0
    %v3086 = vadd.f32 %v2701, %v3085
    %v3087 = vpop.f32.mrf.mxu0
    %3088 = vdwg.mxu0
    %3089 = vmatpush.bf16.msra.mxu0 %v2927
    %3090 = vmatpush.bf16.msra.mxu0 %v2925
    %3091 = vmatpush.bf16.msra.mxu0 %v2923
    %3092 = vmatpush.bf16.msra.mxu0 %v2921
    %3093 = vmatpush.bf16.msra.mxu0 %v2919
    %3094 = vmatpush.bf16.msra.mxu0 %v2917
    %3095 = vmatpush.bf16.msra.mxu0 %v2915
    %3096 = vmatpush.bf16.msra.mxu0 %v2913
    %3097 = vmatmul.bf16.gmra.mxu0 %v2630
    %v3098 = vpop.f32.mrf.mxu0
    %v3099 = vadd.f32 %v3086, %v3098
    %v3100 = vpop.f32.mrf.mxu0
    %3101 = vdwg.mxu0
    %3102 = vmatpush.bf16.msra.mxu0 %v2943
    %3103 = vmatpush.bf16.msra.mxu0 %v2941
    %3104 = vmatpush.bf16.msra.mxu0 %v2939
    %3105 = vmatpush.bf16.msra.mxu0 %v2937
    %3106 = vmatpush.bf16.msra.mxu0 %v2935
    %3107 = vmatpush.bf16.msra.mxu0 %v2933
    %3108 = vmatpush.bf16.msra.mxu0 %v2931
    %3109 = vmatpush.bf16.msra.mxu0 %v2929
    %3110 = vmatmul.bf16.gmra.mxu0 %v2631
    %v3111 = vpop.f32.mrf.mxu0
    %v3112 = vadd.f32 %v3099, %v3111
    %v3113 = vpop.f32.mrf.mxu0
    %3114 = vdwg.mxu0
    %3115 = vmatpush.bf16.msra.mxu0 %v2959
    %3116 = vmatpush.bf16.msra.mxu0 %v2957
    %3117 = vmatpush.bf16.msra.mxu0 %v2955
    %3118 = vmatpush.bf16.msra.mxu0 %v2953
    %3119 = vmatpush.bf16.msra.mxu0 %v2951
    %3120 = vmatpush.bf16.msra.mxu0 %v2949
    %3121 = vmatpush.bf16.msra.mxu0 %v2947
    %3122 = vmatpush.bf16.msra.mxu0 %v2945
    %3123 = vmatmul.bf16.gmra.mxu0 %v2632
    %v3124 = vpop.f32.mrf.mxu0
    %v3125 = vadd.f32 %v3112, %v3124
    %v3126 = vpop.f32.mrf.mxu0
    %3127 = vdwg.mxu0
    %vm3128 = vcmp.ge.f32.partialorder %v3073, 0.0
    %vm3129 = vcmp.ge.f32.partialorder %v3125, 0.0
    %v3130 = vmul.f32 %v3073, 0.01
    %v3131 = vmul.f32 %v3125, 0.01
    %v3132 = vsel %vm3128, %v3073, %v3130
    %v3133 = vsel %vm3129, %v3125, %v3131
    %v3134 = vpack.c.bf16 %v3132, %v3132
    %v3135 = vpack.c.bf16 %v3133, %v3133
    %v3136 = vld [vmem:[%s5] sm:$0xf]
    %v3137 = vld [vmem:[%s5 + $0x4] sm:$0xf]
    %v3138 = vld [vmem:[%s5 + $0x8] sm:$0xf]
    %v3139 = vld [vmem:[%s5 + $0xc] sm:$0xf]
    %v3140 = vld [vmem:[%s5 + $0x10] sm:$0xf]
    %v3141 = vld [vmem:[%s5 + $0x14] sm:$0xf]
    %v3142 = vld [vmem:[%s5 + $0x18] sm:$0xf]
    %v3143 = vld [vmem:[%s5 + $0x1c] sm:$0xf]
    %v3144 = vld [vmem:[%s5 + $0x20] sm:$0xf]
    %v3145 = vld [vmem:[%s5 + $0x24] sm:$0xf]
    %v3146 = vld [vmem:[%s5 + $0x28] sm:$0xf]
    %v3147 = vld [vmem:[%s5 + $0x2c] sm:$0xf]
    %v3148 = vld [vmem:[%s5 + $0x30] sm:$0xf]
    %v3149 = vld [vmem:[%s5 + $0x34] sm:$0xf]
    %v3150 = vld [vmem:[%s5 + $0x38] sm:$0xf]
    %v3151 = vld [vmem:[%s5 + $0x3c] sm:$0xf]
    %v3152 = vld [vmem:[%s5 + $0x40] sm:$0xf]
    %v3153 = vld [vmem:[%s5 + $0x44] sm:$0xf]
    %v3154 = vld [vmem:[%s5 + $0x48] sm:$0xf]
    %v3155 = vld [vmem:[%s5 + $0x4c] sm:$0xf]
    %v3156 = vld [vmem:[%s5 + $0x50] sm:$0xf]
    %v3157 = vld [vmem:[%s5 + $0x54] sm:$0xf]
    %v3158 = vld [vmem:[%s5 + $0x58] sm:$0xf]
    %v3159 = vld [vmem:[%s5 + $0x5c] sm:$0xf]
    %v3160 = vld [vmem:[%s5 + $0x60] sm:$0xf]
    %v3161 = vld [vmem:[%s5 + $0x64] sm:$0xf]
    %v3162 = vld [vmem:[%s5 + $0x68] sm:$0xf]
    %v3163 = vld [vmem:[%s5 + $0x6c] sm:$0xf]
    %v3164 = vld [vmem:[%s5 + $0x70] sm:$0xf]
    %v3165 = vld [vmem:[%s5 + $0x74] sm:$0xf]
    %v3166 = vld [vmem:[%s5 + $0x78] sm:$0xf]
    %v3167 = vld [vmem:[%s5 + $0x7c] sm:$0xf]
    %v3168 = vld [vmem:[%s7 + $0x4] ss:$0 sm:$0xff]
    %v3201 = vunpack.c.l.b16 %v3136
    %v3202 = vunpack.c.l.b16 %v3137
    %v3203 = vunpack.c.l.b16 %v3138
    %v3204 = vunpack.c.l.b16 %v3139
    %v3205 = vunpack.c.l.b16 %v3140
    %v3206 = vunpack.c.l.b16 %v3141
    %v3207 = vunpack.c.l.b16 %v3142
    %v3208 = vunpack.c.l.b16 %v3143
    %v3209 = vunpack.c.l.b16 %v3144
    %v3210 = vunpack.c.l.b16 %v3145
    %v3211 = vunpack.c.l.b16 %v3146
    %v3212 = vunpack.c.l.b16 %v3147
    %v3213 = vunpack.c.l.b16 %v3148
    %v3214 = vunpack.c.l.b16 %v3149
    %v3215 = vunpack.c.l.b16 %v3150
    %v3216 = vunpack.c.l.b16 %v3151
    %v3217 = vunpack.c.l.b16 %v3152
    %v3218 = vunpack.c.l.b16 %v3153
    %v3219 = vunpack.c.l.b16 %v3154
    %v3220 = vunpack.c.l.b16 %v3155
    %v3221 = vunpack.c.l.b16 %v3156
    %v3222 = vunpack.c.l.b16 %v3157
    %v3223 = vunpack.c.l.b16 %v3158
    %v3224 = vunpack.c.l.b16 %v3159
    %v3225 = vunpack.c.l.b16 %v3160
    %v3226 = vunpack.c.l.b16 %v3161
    %v3227 = vunpack.c.l.b16 %v3162
    %v3228 = vunpack.c.l.b16 %v3163
    %v3229 = vunpack.c.l.b16 %v3164
    %v3230 = vunpack.c.l.b16 %v3165
    %v3231 = vunpack.c.l.b16 %v3166
    %v3232 = vunpack.c.l.b16 %v3167
    %v3233 = vpack.c.b16 %v3202, %v3201
    %v3234 = vpack.c.b16 %v3204, %v3203
    %v3235 = vpack.c.b16 %v3206, %v3205
    %v3236 = vpack.c.b16 %v3208, %v3207
    %v3237 = vpack.c.b16 %v3210, %v3209
    %v3238 = vpack.c.b16 %v3212, %v3211
    %v3239 = vpack.c.b16 %v3214, %v3213
    %v3240 = vpack.c.b16 %v3216, %v3215
    %v3241 = vpack.c.b16 %v3218, %v3217
    %v3242 = vpack.c.b16 %v3220, %v3219
    %v3243 = vpack.c.b16 %v3222, %v3221
    %v3244 = vpack.c.b16 %v3224, %v3223
    %v3245 = vpack.c.b16 %v3226, %v3225
    %v3246 = vpack.c.b16 %v3228, %v3227
    %v3247 = vpack.c.b16 %v3230, %v3229
    %v3248 = vpack.c.b16 %v3232, %v3231
    %3265 = vmatpush.bf16.msra.mxu0 %v3240
    %3266 = vmatpush.bf16.msra.mxu0 %v3239
    %3267 = vmatpush.bf16.msra.mxu0 %v3238
    %3268 = vmatpush.bf16.msra.mxu0 %v3237
    %3269 = vmatpush.bf16.msra.mxu0 %v3236
    %3270 = vmatpush.bf16.msra.mxu0 %v3235
    %3271 = vmatpush.bf16.msra.mxu0 %v3234
    %3272 = vmatpush.bf16.msra.mxu0 %v3233
    %3273 = vmatmul.bf16.gmra.mxu0 %v3134
    %v3274 = vpop.f32.mrf.mxu0
    %v3275 = vadd.f32 %v3168, %v3274
    %v3276 = vpop.f32.mrf.mxu0
    %3277 = vdwg.mxu0
    %3278 = vmatpush.bf16.msra.mxu0 %v3248
    %3279 = vmatpush.bf16.msra.mxu0 %v3247
    %3280 = vmatpush.bf16.msra.mxu0 %v3246
    %3281 = vmatpush.bf16.msra.mxu0 %v3245
    %3282 = vmatpush.bf16.msra.mxu0 %v3244
    %3283 = vmatpush.bf16.msra.mxu0 %v3243
    %3284 = vmatpush.bf16.msra.mxu0 %v3242
    %3285 = vmatpush.bf16.msra.mxu0 %v3241
    %3286 = vmatmul.bf16.gmra.mxu0 %v3135
    %v3287 = vpop.f32.mrf.mxu0
    %v3288 = vadd.f32 %v3275, %v3287
    %v3289 = vpop.f32.mrf.mxu0
    %3290 = vdwg.mxu0
    %vm3291 = vcmp.ge.f32.partialorder %v3288, 0.0
    %v3292 = vmul.f32 %v3288, 0.01
    %v3293 = vsel %vm3291, %v3288, %v3292
    %v3294 = vpack.c.bf16 %v3293, %v3293
    %v3295 = vld [vmem:[%s6] sm:$0xf]
    %v3296 = vld [vmem:[%s6 + $0x4] sm:$0xf]
    %v3297 = vld [vmem:[%s6 + $0x8] sm:$0xf]
    %v3298 = vld [vmem:[%s6 + $0xc] sm:$0xf]
    %v3299 = vld [vmem:[%s6 + $0x10] sm:$0xf]
    %v3300 = vld [vmem:[%s6 + $0x14] sm:$0xf]
    %v3301 = vld [vmem:[%s6 + $0x18] sm:$0xf]
    %v3302 = vld [vmem:[%s6 + $0x1c] sm:$0xf]
    %v3303 = vld [vmem:[%s6 + $0x20] sm:$0xf]
    %v3304 = vld [vmem:[%s6 + $0x24] sm:$0xf]
    %v3305 = vld [vmem:[%s6 + $0x28] sm:$0xf]
    %v3306 = vld [vmem:[%s6 + $0x2c] sm:$0xf]
    %v3307 = vld [vmem:[%s6 + $0x30] sm:$0xf]
    %v3308 = vld [vmem:[%s6 + $0x34] sm:$0xf]
    %v3309 = vld [vmem:[%s6 + $0x38] sm:$0xf]
    %v3310 = vld [vmem:[%s6 + $0x3c] sm:$0xf]
    %v3311 = vld [vmem:[%s7 + $0x5] ss:$0 sm:$0xff]
    %v3328 = vunpack.c.l.b16 %v3295
    %v3329 = vunpack.c.l.b16 %v3296
    %v3330 = vunpack.c.l.b16 %v3297
    %v3331 = vunpack.c.l.b16 %v3298
    %v3332 = vunpack.c.l.b16 %v3299
    %v3333 = vunpack.c.l.b16 %v3300
    %v3334 = vunpack.c.l.b16 %v3301
    %v3335 = vunpack.c.l.b16 %v3302
    %v3336 = vunpack.c.l.b16 %v3303
    %v3337 = vunpack.c.l.b16 %v3304
    %v3338 = vunpack.c.l.b16 %v3305
    %v3339 = vunpack.c.l.b16 %v3306
    %v3340 = vunpack.c.l.b16 %v3307
    %v3341 = vunpack.c.l.b16 %v3308
    %v3342 = vunpack.c.l.b16 %v3309
    %v3343 = vunpack.c.l.b16 %v3310
    %v3344 = vpack.c.b16 %v3329, %v3328
    %v3345 = vpack.c.b16 %v3331, %v3330
    %v3346 = vpack.c.b16 %v3333, %v3332
    %v3347 = vpack.c.b16 %v3335, %v3334
    %v3348 = vpack.c.b16 %v3337, %v3336
    %v3349 = vpack.c.b16 %v3339, %v3338
    %v3350 = vpack.c.b16 %v3341, %v3340
    %v3351 = vpack.c.b16 %v3343, %v3342
    %3360 = vmatpush.bf16.msra.mxu0 %v3351
    %3361 = vmatpush.bf16.msra.mxu0 %v3350
    %3362 = vmatpush.bf16.msra.mxu0 %v3349
    %3363 = vmatpush.bf16.msra.mxu0 %v3348
    %3364 = vmatpush.bf16.msra.mxu0 %v3347
    %3365 = vmatpush.bf16.msra.mxu0 %v3346
    %3366 = vmatpush.bf16.msra.mxu0 %v3345
    %3367 = vmatpush.bf16.msra.mxu0 %v3344
    %3368 = vmatmul.bf16.gmra.mxu0 %v3294
    %v3369 = vpop.f32.mrf.mxu0
    %v3370 = vadd.f32 %v3311, %v3369
    %v3371 = vpop.f32.mrf.mxu0
    %3372 = vdwg.mxu0
    %3373 = vst [vmem:[#allocation2] sm:$0xff] %v3293
    %3374 = vst [vmem:[%s9] sm:$0xff] %v3370
    // Predicated region
    $region34: #{server_resnet_standalone_forward.1} parent=1 // pred_check
      _
    $region35: #{server_resnet_standalone_forward.1} parent=1 // pred_check_branch
      %3376 = sbr.rel (0) target = $region37
    $region36: #{server_resnet_standalone_forward.1} parent=1 // pred_region
      %3378 = vsyncadd [#allocation3], 0
      %s3380 = sshll.u32 [#allocation2], 4
      %s3381 = int_to_ptr.vmem [resolvable:$true] %s3380
      %s3382 = sshll.u32 %s8, 4
      %s3383 = int_to_ptr.hbm [resolvable:$true] %s3382
      %3385 = dma.vmem_to_hbm [thread:$0]  %s3381, 128, %s3383, [#allocation3]
    $region37: #{server_resnet_standalone_forward.1} parent=1 // pred_fallthru
      _
    // Predicated region
    $region38: #{server_resnet_standalone_forward.1} parent=1 // pred_check
      _
    $region39: #{server_resnet_standalone_forward.1} parent=1 // pred_check_branch
      %3387 = sbr.rel (0) target = $region41
    $region40: #{server_resnet_standalone_forward.1} parent=1 // pred_region
      _
    $region41: #{server_resnet_standalone_forward.1} parent=1 // pred_fallthru
      _
    // Predicated region
    $region42: #{server_resnet_standalone_forward.1} parent=1 // pred_check
      _
    $region43: #{server_resnet_standalone_forward.1} parent=1 // pred_check_branch
      %3389 = sbr.rel (0) target = $region45
    $region44: #{server_resnet_standalone_forward.1} parent=1 // pred_region
      %3391 = dma.done [#allocation3], 128
    $region45: #{server_resnet_standalone_forward.1} parent=1 // pred_fallthru
      _
    // Predicated region
    $region46: #{server_resnet_standalone_forward.1} parent=1 // pred_check
      _
    $region47: #{server_resnet_standalone_forward.1} parent=1 // pred_check_branch
      %3393 = sbr.rel (0) target = $region49
    $region48: #{server_resnet_standalone_forward.1} parent=1 // pred_region
      _
    $region49: #{server_resnet_standalone_forward.1} parent=1 // pred_fallthru
      _
    %3394 = vsyncpa [#allocation3], 1

</llo_original>
